<compile_context>
chip_gen: v7x
topology: tpu7x:2x2x1
jax: 0.10.0
libtpu: 0.0.40
codegen_flags: <defaults>
</compile_context>

<pallas_src>
import jax
import jax.numpy as jnp
from jax.experimental import pallas as pl
from jax.experimental.pallas import tpu as pltpu  # noqa: F401  (TPU backend)

# ---- model dimensions (small, consistent with a tiny causal LM) -------------
B = 2        # batch
S = 8        # sequence length (power of two -> shift/mask index math)
D = 32       # hidden size
H = 2        # attention heads
HD = D // H  # head dim
F = 64       # MLP hidden size
V = 128      # vocab size
BS = B * S   # flattened batch*seq rows inside the kernel
QKV_W = 128  # packed q|k|v (3*D=96) zero-padded to a lane-dense 128-wide matmul
EPS = 1e-5
assert 3 * D <= QKV_W
assert S & (S - 1) == 0, "S must be a power of two for in-kernel shift/mask math"
SEQ_SHIFT = S.bit_length() - 1


def _gelu_tanh(x):
    return 0.5 * x * (1.0 + jnp.tanh(0.7978845608028654 * (x + 0.044715 * x * x * x)))


def _layernorm(x, gamma, beta):
    mu = jnp.mean(x, axis=-1, keepdims=True)
    var = jnp.mean((x - mu) ** 2, axis=-1, keepdims=True)
    return (x - mu) * jax.lax.rsqrt(var + EPS) * gamma + beta


# -----------------------------------------------------------------------------
# Pallas kernel: embedding lookup + full transformer block + LM head for the
# whole (flattened) batch in ONE invocation (no grid).
# -----------------------------------------------------------------------------
def lm_kernel(ids_ref,    # [BS, 1]     token ids (batch flattened)
              mask_ref,   # [1, BS]     attention mask (1=keep, 0=pad)
              emb_ref,    # [V, D]      embedding table
              wqkv_ref,   # [D, QKV_W]  packed [Wq*scale | Wk | Wv | 0], LoRA folded
              wo_ref,     # [H, HD, D]  per-head o-projection rows, LoRA folded
              pk_ref,     # [8, F]      rows 0..5: ln1/ln2/lnf g,b (cols :D),
                          #             row 6: b_mlp2 (cols :D), row 7: b_mlp1
              w1_ref,     # [D, F]
              w2_ref,     # [F, D]
              wlm_ref,    # [D, V]      LM head
              out_ref):   # [BS, V]     logits
    pk = pk_ref[...]                                     # [8, F]

    # ---- embedding lookup: one-hot x table on the MXU (no gather) ----
    ids = ids_ref[...]                                   # [BS, 1] int32
    vocab = jax.lax.broadcasted_iota(jnp.int32, (BS, V), 1)
    one_hot = (vocab == ids).astype(jnp.float32)         # [BS, V]
    x = jnp.dot(one_hot, emb_ref[...], preferred_element_type=jnp.float32)  # [BS, D]

    # ---- combined causal / block-diag / key-padding bias, built in VMEM ----
    # Two-level negative bias: within-batch disallowed -> -1e9, cross-batch ->
    # -2e9.  For fully-padded (left-pad) query rows this degenerates to a
    # softmax over that sequence's own keys only, matching the per-batch ref.
    row = jax.lax.broadcasted_iota(jnp.int32, (BS, BS), 0)
    col = jax.lax.broadcasted_iota(jnp.int32, (BS, BS), 1)
    same_batch = (row >> SEQ_SHIFT) == (col >> SEQ_SHIFT)
    causal = (col & (S - 1)) <= (row & (S - 1))
    key_ok = mask_ref[...] > 0                           # [1, BS] -> bcast rows
    allow = same_batch & causal & key_ok
    bias = jnp.where(allow, 0.0,
                     jnp.where(same_batch, -1e9, -2e9)).astype(jnp.float32)

    # ---- attention block (q/k/v fused into one lane-dense matmul) ----
    h1 = _layernorm(x, pk[0, :D], pk[1, :D])
    qkv = jnp.dot(h1, wqkv_ref[...], preferred_element_type=jnp.float32)  # [BS, 128]

    attn_proj = jnp.zeros((BS, D), jnp.float32)
    for hi in range(H):
        qh = qkv[:, hi * HD:(hi + 1) * HD]               # already scaled by 1/sqrt(HD)
        kh = qkv[:, D + hi * HD:D + (hi + 1) * HD]
        vh = qkv[:, 2 * D + hi * HD:2 * D + (hi + 1) * HD]
        s = jnp.dot(qh, kh.T, preferred_element_type=jnp.float32) + bias  # [BS, BS]
        m = jnp.max(s, axis=-1, keepdims=True)
        p = jnp.exp(s - m)
        p = p * pl.reciprocal(jnp.sum(p, axis=-1, keepdims=True), approx=True)
        ho = jnp.dot(p, vh, preferred_element_type=jnp.float32)           # [BS, HD]
        # fold the o-projection into the head loop: no concatenate / lane writes
        attn_proj = attn_proj + jnp.dot(ho, wo_ref[hi],
                                        preferred_element_type=jnp.float32)

    x = x + attn_proj

    # ---- MLP block ----
    h2 = _layernorm(x, pk[2, :D], pk[3, :D])
    m1 = _gelu_tanh(jnp.dot(h2, w1_ref[...], preferred_element_type=jnp.float32)
                    + pk[7, :])
    x = x + jnp.dot(m1, w2_ref[...], preferred_element_type=jnp.float32) + pk[6, :D]

    # ---- final LN + LM head (lane-dense [BS, V] = [16, 128] output) ----
    hf = _layernorm(x, pk[4, :D], pk[5, :D])
    out_ref[...] = jnp.dot(hf, wlm_ref[...], preferred_element_type=jnp.float32)


# -----------------------------------------------------------------------------
# Wrapper: parameter folding / packing (cheap XLA glue), then one pallas_call.
# -----------------------------------------------------------------------------
def _prepare_kernel_params(params):
    # Fold rank-1 LoRA (alpha/r = 1):  w_eff = W + a^T @ b
    w_eff = params["w_attn"] + jnp.matmul(
        jnp.transpose(params["a_lora"], (0, 2, 1)), params["b_lora"])      # [4, D, D]
    scale = 1.0 / (HD ** 0.5)
    wq = w_eff[0] * scale                      # fold 1/sqrt(HD) into q columns
    wk, wv, wo = w_eff[1], w_eff[2], w_eff[3]
    w_qkv = jnp.concatenate(
        [wq, wk, wv, jnp.zeros((D, QKV_W - 3 * D), jnp.float32)], axis=1)  # [D, 128]
    w_o_heads = wo.reshape(H, HD, D)                                       # [H, HD, D]
    narrow = jnp.concatenate([
        params["ln1"].reshape(2, D),
        params["ln2"].reshape(2, D),
        params["lnf"].reshape(2, D),
        params["b_mlp2"].reshape(1, D),
    ], axis=0)                                                             # [7, D]
    narrow = jnp.pad(narrow, ((0, 0), (0, F - D)))                         # [7, F]
    pk = jnp.concatenate([narrow, params["b_mlp1"].reshape(1, F)], axis=0)  # [8, F]
    return w_qkv, w_o_heads, pk


@jax.jit
def forward_pallas(params, input_ids, attention_mask):
    w_qkv, w_o_heads, pk = _prepare_kernel_params(params)
    ids = input_ids.reshape(BS, 1).astype(jnp.int32)
    mask = attention_mask.reshape(1, BS).astype(jnp.int32)

    out = pl.pallas_call(
        lm_kernel,
        out_shape=jax.ShapeDtypeStruct((BS, V), jnp.float32),
        # no grid: one step over the whole (tiny) problem; everything lives in
        # VMEM as full-array blocks (weights + activations ~60 KB total).
    )(ids, mask, params["emb"], w_qkv, w_o_heads, pk,
      params["w_mlp1"], params["w_mlp2"], params["w_lm"])
    return out.reshape(B, S, V)


# -----------------------------------------------------------------------------
# Pure-JAX reference (original unfused math) for validation.
# -----------------------------------------------------------------------------
def forward_ref(params, input_ids, attention_mask):
    x = params["emb"][input_ids].astype(jnp.float32)      # [B, S, D]
    mask = attention_mask.astype(jnp.float32)             # [B, S]
    scale = 1.0 / (HD ** 0.5)

    def lora_proj(h, idx):
        w = params["w_attn"][idx]
        a = params["a_lora"][idx]                          # [1, D]
        bl = params["b_lora"][idx]
        return h @ w + jnp.sum(h * a, axis=-1, keepdims=True) * bl

    h1 = _layernorm(x, params["ln1"][0], params["ln1"][1])
    q, k, v = lora_proj(h1, 0), lora_proj(h1, 1), lora_proj(h1, 2)
    qh = q.reshape(B, S, H, HD).transpose(0, 2, 1, 3)
    kh = k.reshape(B, S, H, HD).transpose(0, 2, 1, 3)
    vh = v.reshape(B, S, H, HD).transpose(0, 2, 1, 3)
    s = jnp.einsum("bhqd,bhkd->bhqk", qh, kh) * scale
    causal = jnp.tril(jnp.ones((S, S), bool))
    allow = causal[None, None] & (mask[:, None, None, :] > 0.5)
    s = s + jnp.where(allow, 0.0, -1e9)
    p = jax.nn.softmax(s, axis=-1)
    o = jnp.einsum("bhqk,bhkd->bhqd", p, vh).transpose(0, 2, 1, 3).reshape(B, S, D)
    x = x + lora_proj(o, 3)

    h2 = _layernorm(x, params["ln2"][0], params["ln2"][1])
    m = _gelu_tanh(h2 @ params["w_mlp1"] + params["b_mlp1"]) @ params["w_mlp2"] + params["b_mlp2"]
    x = x + m
    hf = _layernorm(x, params["lnf"][0], params["lnf"][1])
    return hf @ params["w_lm"]


def init_params(key):
    ks = jax.random.split(key, 12)
    n = lambda k, shape, s=0.02: (jax.random.normal(k, shape, jnp.float32) * s)
    ones_beta = lambda: jnp.stack([jnp.ones((1, D), jnp.float32),
                                   jnp.zeros((1, D), jnp.float32)], axis=0)
    return {
        "emb": n(ks[0], (V, D)),
        "w_attn": n(ks[1], (4, D, D)),
        # NOTE: PEFT inits lora_B to 0; small random values so the LoRA path is
        # numerically exercised (same fold either way).
        "a_lora": n(ks[2], (4, 1, D)),
        "b_lora": n(ks[3], (4, 1, D)),
        "ln1": ones_beta(),
        "ln2": ones_beta(),
        "lnf": ones_beta(),
        "w_mlp1": n(ks[4], (D, F)),
        "b_mlp1": n(ks[5], (1, F)),
        "w_mlp2": n(ks[6], (F, D)),
        "b_mlp2": n(ks[7], (1, D)),
        "w_lm": n(ks[8], (D, V)),
    }


if __name__ == "__main__":
    key = jax.random.PRNGKey(0)
    pkey, ikey = jax.random.split(key)
    params = init_params(pkey)

    input_ids = jax.random.randint(ikey, (B, S), 0, V, dtype=jnp.int32)
    # left padding (padding_side='left'): second sequence has 3 leading pads
    attention_mask = jnp.array(
        [[1] * S, [0, 0, 0] + [1] * (S - 3)], dtype=jnp.int32)

    logits = forward_pallas(params, input_ids, attention_mask)
    logits = jax.block_until_ready(logits)

    ref = forward_ref(params, input_ids, attention_mask)
    assert logits.shape == (B, S, V)
    # tolerance slightly relaxed vs. exact-divide version due to the EUP
    # approximate reciprocal in the softmax (error << 1e-3 at these scales).
    assert jnp.allclose(logits, ref, rtol=2e-3, atol=2e-3), "mismatch vs JAX reference"

    # TODO(synk): tokenizer loading, pretrained HF weights, and generate()'s
    # autoregressive sampling loop have no Pallas equivalent and are omitted.
    print("KERNEL_OK")
</pallas_src>

<mosaic_0001>
module attributes {stable_mosaic.version = 11 : i64} {
  func.func @lm_kernel(%arg0: memref<16x1xi32, #tpu.memory_space<vmem>>, %arg1: memref<1x16xi32, #tpu.memory_space<vmem>>, %arg2: memref<128x32xf32, #tpu.memory_space<vmem>>, %arg3: memref<32x128xf32, #tpu.memory_space<vmem>>, %arg4: memref<2x16x32xf32, #tpu.memory_space<vmem>>, %arg5: memref<8x64xf32, #tpu.memory_space<vmem>>, %arg6: memref<32x64xf32, #tpu.memory_space<vmem>>, %arg7: memref<64x32xf32, #tpu.memory_space<vmem>>, %arg8: memref<32x128xf32, #tpu.memory_space<vmem>>, %arg9: memref<16x128xf32, #tpu.memory_space<vmem>>) attributes {dimension_semantics = [], scalar_prefetch = 0 : i64, scratch_operands = 0 : i64, tpu.core_type = #tpu.core_type<tc>} {
    %c0 = arith.constant 0 : index
    %c0_0 = arith.constant 0 : index
    %0 = vector.load %arg5[%c0, %c0_0] : memref<8x64xf32, #tpu.memory_space<vmem>>, vector<8x64xf32>
    %c0_1 = arith.constant 0 : index
    %c0_2 = arith.constant 0 : index
    %1 = vector.load %arg0[%c0_1, %c0_2] : memref<16x1xi32, #tpu.memory_space<vmem>>, vector<16x1xi32>
    %2 = tpu.iota {dimensions = array<i32: 1>} : vector<16x128xi32>
    %3 = vector.broadcast %1 : vector<16x1xi32> to vector<16x128xi32>
    %4 = arith.cmpi eq, %2, %3 : vector<16x128xi32>
    %5 = arith.extui %4 : vector<16x128xi1> to vector<16x128xi32>
    %6 = arith.sitofp %5 : vector<16x128xi32> to vector<16x128xf32>
    %c0_3 = arith.constant 0 : index
    %c0_4 = arith.constant 0 : index
    %7 = vector.load %arg2[%c0_3, %c0_4] : memref<128x32xf32, #tpu.memory_space<vmem>>, vector<128x32xf32>
    %cst = arith.constant dense<0.000000e+00> : vector<16x32xf32>
    %8 = tpu.matmul %6, %7, %cst {dimension_numbers = #tpu.dot_dimension_numbers<[1], [0], [0], [1], [0, 0, 1, 1], [], []>} : vector<16x128xf32>, vector<128x32xf32>, vector<16x32xf32> -> vector<16x32xf32>
    %9 = tpu.iota {dimensions = array<i32: 0>} : vector<16x16xi32>
    %10 = tpu.iota {dimensions = array<i32: 1>} : vector<16x16xi32>
    %c3_i32 = arith.constant 3 : i32
    %11 = vector.broadcast %c3_i32 : i32 to vector<16x16xi32>
    %12 = arith.shrsi %9, %11 : vector<16x16xi32>
    %c3_i32_5 = arith.constant 3 : i32
    %13 = vector.broadcast %c3_i32_5 : i32 to vector<16x16xi32>
    %14 = arith.shrsi %10, %13 : vector<16x16xi32>
    %15 = arith.cmpi eq, %12, %14 : vector<16x16xi32>
    %c7_i32 = arith.constant 7 : i32
    %16 = vector.broadcast %c7_i32 : i32 to vector<16x16xi32>
    %17 = arith.andi %10, %16 : vector<16x16xi32>
    %c7_i32_6 = arith.constant 7 : i32
    %18 = vector.broadcast %c7_i32_6 : i32 to vector<16x16xi32>
    %19 = arith.andi %9, %18 : vector<16x16xi32>
    %20 = arith.cmpi sle, %17, %19 : vector<16x16xi32>
    %c0_7 = arith.constant 0 : index
    %c0_8 = arith.constant 0 : index
    %21 = vector.load %arg1[%c0_7, %c0_8] : memref<1x16xi32, #tpu.memory_space<vmem>>, vector<1x16xi32>
    %c0_i32 = arith.constant 0 : i32
    %22 = vector.broadcast %c0_i32 : i32 to vector<1x16xi32>
    %23 = arith.cmpi sgt, %21, %22 : vector<1x16xi32>
    %24 = arith.andi %15, %20 : vector<16x16xi1>
    %25 = vector.broadcast %23 : vector<1x16xi1> to vector<16x16xi1>
    %26 = arith.andi %24, %25 : vector<16x16xi1>
    %cst_9 = arith.constant -1.000000e+09 : f32
    %cst_10 = arith.constant -2.000000e+09 : f32
    %27 = vector.broadcast %cst_9 : f32 to vector<16x16xf32>
    %28 = vector.broadcast %cst_10 : f32 to vector<16x16xf32>
    %29 = arith.select %15, %27, %28 : vector<16x16xi1>, vector<16x16xf32>
    %cst_11 = arith.constant 0.000000e+00 : f32
    %30 = vector.broadcast %cst_11 : f32 to vector<16x16xf32>
    %31 = arith.select %26, %30, %29 : vector<16x16xi1>, vector<16x16xf32>
    %32 = vector.extract_strided_slice %0 {offsets = [0, 0], sizes = [1, 32], strides = [1, 1]} : vector<8x64xf32> to vector<1x32xf32>
    %33 = vector.shape_cast %32 : vector<1x32xf32> to vector<32xf32>
    %34 = vector.extract_strided_slice %0 {offsets = [1, 0], sizes = [1, 32], strides = [1, 1]} : vector<8x64xf32> to vector<1x32xf32>
    %35 = vector.shape_cast %34 : vector<1x32xf32> to vector<32xf32>
    %cst_12 = arith.constant dense<0.000000e+00> : vector<16xf32>
    %36 = vector.multi_reduction <add>, %8, %cst_12 [1] : vector<16x32xf32> to vector<16xf32>
    %37 = vector.shape_cast %36 : vector<16xf32> to vector<16x1xf32>
    %cst_13 = arith.constant 3.200000e+01 : f32
    %38 = vector.broadcast %cst_13 : f32 to vector<16x1xf32>
    %39 = arith.divf %37, %38 : vector<16x1xf32>
    %40 = vector.broadcast %39 : vector<16x1xf32> to vector<16x32xf32>
    %41 = arith.subf %8, %40 : vector<16x32xf32>
    %42 = arith.mulf %41, %41 : vector<16x32xf32>
    %cst_14 = arith.constant dense<0.000000e+00> : vector<16xf32>
    %43 = vector.multi_reduction <add>, %42, %cst_14 [1] : vector<16x32xf32> to vector<16xf32>
    %44 = vector.shape_cast %43 : vector<16xf32> to vector<16x1xf32>
    %cst_15 = arith.constant 3.200000e+01 : f32
    %45 = vector.broadcast %cst_15 : f32 to vector<16x1xf32>
    %46 = arith.divf %44, %45 : vector<16x1xf32>
    %47 = vector.broadcast %39 : vector<16x1xf32> to vector<16x32xf32>
    %48 = arith.subf %8, %47 : vector<16x32xf32>
    %cst_16 = arith.constant 9.99999974E-6 : f32
    %49 = vector.broadcast %cst_16 : f32 to vector<16x1xf32>
    %50 = arith.addf %46, %49 : vector<16x1xf32>
    %51 = math.rsqrt %50 : vector<16x1xf32>
    %52 = vector.broadcast %51 : vector<16x1xf32> to vector<16x32xf32>
    %53 = arith.mulf %48, %52 : vector<16x32xf32>
    %54 = vector.shape_cast %33 : vector<32xf32> to vector<1x32xf32>
    %55 = vector.broadcast %54 : vector<1x32xf32> to vector<16x32xf32>
    %56 = arith.mulf %53, %55 : vector<16x32xf32>
    %57 = vector.shape_cast %35 : vector<32xf32> to vector<1x32xf32>
    %58 = vector.broadcast %57 : vector<1x32xf32> to vector<16x32xf32>
    %59 = arith.addf %56, %58 : vector<16x32xf32>
    %c0_17 = arith.constant 0 : index
    %c0_18 = arith.constant 0 : index
    %60 = vector.load %arg3[%c0_17, %c0_18] : memref<32x128xf32, #tpu.memory_space<vmem>>, vector<32x128xf32>
    %cst_19 = arith.constant dense<0.000000e+00> : vector<16x128xf32>
    %61 = tpu.matmul %59, %60, %cst_19 {dimension_numbers = #tpu.dot_dimension_numbers<[1], [0], [0], [1], [0, 0, 1, 1], [], []>} : vector<16x32xf32>, vector<32x128xf32>, vector<16x128xf32> -> vector<16x128xf32>
    %cst_20 = arith.constant 0.000000e+00 : f32
    %62 = vector.broadcast %cst_20 : f32 to vector<16x32xf32>
    %63 = vector.extract_strided_slice %61 {offsets = [0, 0], sizes = [16, 16], strides = [1, 1]} : vector<16x128xf32> to vector<16x16xf32>
    %64 = vector.extract_strided_slice %61 {offsets = [0, 32], sizes = [16, 16], strides = [1, 1]} : vector<16x128xf32> to vector<16x16xf32>
    %65 = vector.extract_strided_slice %61 {offsets = [0, 64], sizes = [16, 16], strides = [1, 1]} : vector<16x128xf32> to vector<16x16xf32>
    %66 = tpu.transpose %64, [1, 0] : vector<16x16xf32> -> vector<16x16xf32>
    %cst_21 = arith.constant dense<0.000000e+00> : vector<16x16xf32>
    %67 = tpu.matmul %63, %66, %cst_21 {dimension_numbers = #tpu.dot_dimension_numbers<[1], [0], [0], [1], [0, 0, 1, 1], [], []>} : vector<16x16xf32>, vector<16x16xf32>, vector<16x16xf32> -> vector<16x16xf32>
    %68 = arith.addf %67, %31 : vector<16x16xf32>
    %cst_22 = arith.constant dense<0xFF800000> : vector<16xf32>
    %69 = vector.multi_reduction <maximumf>, %68, %cst_22 [1] : vector<16x16xf32> to vector<16xf32>
    %70 = vector.shape_cast %69 : vector<16xf32> to vector<16x1xf32>
    %71 = vector.broadcast %70 : vector<16x1xf32> to vector<16x16xf32>
    %72 = arith.subf %68, %71 : vector<16x16xf32>
    %73 = math.exp %72 : vector<16x16xf32>
    %cst_23 = arith.constant dense<0.000000e+00> : vector<16xf32>
    %74 = vector.multi_reduction <add>, %73, %cst_23 [1] : vector<16x16xf32> to vector<16xf32>
    %75 = vector.shape_cast %74 : vector<16xf32> to vector<16x1xf32>
    %76 = tpu.reciprocal %75 {approx = true} : vector<16x1xf32> -> vector<16x1xf32>
    %77 = vector.broadcast %76 : vector<16x1xf32> to vector<16x16xf32>
    %78 = arith.mulf %73, %77 : vector<16x16xf32>
    %cst_24 = arith.constant dense<0.000000e+00> : vector<16x16xf32>
    %79 = tpu.matmul %78, %65, %cst_24 {dimension_numbers = #tpu.dot_dimension_numbers<[1], [0], [0], [1], [0, 0, 1, 1], [], []>} : vector<16x16xf32>, vector<16x16xf32>, vector<16x16xf32> -> vector<16x16xf32>
    %c0_25 = arith.constant 0 : index
    %c0_26 = arith.constant 0 : index
    %c0_27 = arith.constant 0 : index
    %80 = vector.load %arg4[%c0_25, %c0_26, %c0_27] : memref<2x16x32xf32, #tpu.memory_space<vmem>>, vector<1x16x32xf32>
    %81 = vector.shape_cast %80 : vector<1x16x32xf32> to vector<16x32xf32>
    %cst_28 = arith.constant dense<0.000000e+00> : vector<16x32xf32>
    %82 = tpu.matmul %79, %81, %cst_28 {dimension_numbers = #tpu.dot_dimension_numbers<[1], [0], [0], [1], [0, 0, 1, 1], [], []>} : vector<16x16xf32>, vector<16x32xf32>, vector<16x32xf32> -> vector<16x32xf32>
    %83 = arith.addf %62, %82 : vector<16x32xf32>
    %84 = vector.extract_strided_slice %61 {offsets = [0, 16], sizes = [16, 16], strides = [1, 1]} : vector<16x128xf32> to vector<16x16xf32>
    %85 = vector.extract_strided_slice %61 {offsets = [0, 48], sizes = [16, 16], strides = [1, 1]} : vector<16x128xf32> to vector<16x16xf32>
    %86 = vector.extract_strided_slice %61 {offsets = [0, 80], sizes = [16, 16], strides = [1, 1]} : vector<16x128xf32> to vector<16x16xf32>
    %87 = tpu.transpose %85, [1, 0] : vector<16x16xf32> -> vector<16x16xf32>
    %cst_29 = arith.constant dense<0.000000e+00> : vector<16x16xf32>
    %88 = tpu.matmul %84, %87, %cst_29 {dimension_numbers = #tpu.dot_dimension_numbers<[1], [0], [0], [1], [0, 0, 1, 1], [], []>} : vector<16x16xf32>, vector<16x16xf32>, vector<16x16xf32> -> vector<16x16xf32>
    %89 = arith.addf %88, %31 : vector<16x16xf32>
    %cst_30 = arith.constant dense<0xFF800000> : vector<16xf32>
    %90 = vector.multi_reduction <maximumf>, %89, %cst_30 [1] : vector<16x16xf32> to vector<16xf32>
    %91 = vector.shape_cast %90 : vector<16xf32> to vector<16x1xf32>
    %92 = vector.broadcast %91 : vector<16x1xf32> to vector<16x16xf32>
    %93 = arith.subf %89, %92 : vector<16x16xf32>
    %94 = math.exp %93 : vector<16x16xf32>
    %cst_31 = arith.constant dense<0.000000e+00> : vector<16xf32>
    %95 = vector.multi_reduction <add>, %94, %cst_31 [1] : vector<16x16xf32> to vector<16xf32>
    %96 = vector.shape_cast %95 : vector<16xf32> to vector<16x1xf32>
    %97 = tpu.reciprocal %96 {approx = true} : vector<16x1xf32> -> vector<16x1xf32>
    %98 = vector.broadcast %97 : vector<16x1xf32> to vector<16x16xf32>
    %99 = arith.mulf %94, %98 : vector<16x16xf32>
    %cst_32 = arith.constant dense<0.000000e+00> : vector<16x16xf32>
    %100 = tpu.matmul %99, %86, %cst_32 {dimension_numbers = #tpu.dot_dimension_numbers<[1], [0], [0], [1], [0, 0, 1, 1], [], []>} : vector<16x16xf32>, vector<16x16xf32>, vector<16x16xf32> -> vector<16x16xf32>
    %c1 = arith.constant 1 : index
    %c0_33 = arith.constant 0 : index
    %c0_34 = arith.constant 0 : index
    %101 = vector.load %arg4[%c1, %c0_33, %c0_34] : memref<2x16x32xf32, #tpu.memory_space<vmem>>, vector<1x16x32xf32>
    %102 = vector.shape_cast %101 : vector<1x16x32xf32> to vector<16x32xf32>
    %cst_35 = arith.constant dense<0.000000e+00> : vector<16x32xf32>
    %103 = tpu.matmul %100, %102, %cst_35 {dimension_numbers = #tpu.dot_dimension_numbers<[1], [0], [0], [1], [0, 0, 1, 1], [], []>} : vector<16x16xf32>, vector<16x32xf32>, vector<16x32xf32> -> vector<16x32xf32>
    %104 = arith.addf %83, %103 : vector<16x32xf32>
    %105 = arith.addf %8, %104 : vector<16x32xf32>
    %106 = vector.extract_strided_slice %0 {offsets = [2, 0], sizes = [1, 32], strides = [1, 1]} : vector<8x64xf32> to vector<1x32xf32>
    %107 = vector.shape_cast %106 : vector<1x32xf32> to vector<32xf32>
    %108 = vector.extract_strided_slice %0 {offsets = [3, 0], sizes = [1, 32], strides = [1, 1]} : vector<8x64xf32> to vector<1x32xf32>
    %109 = vector.shape_cast %108 : vector<1x32xf32> to vector<32xf32>
    %cst_36 = arith.constant dense<0.000000e+00> : vector<16xf32>
    %110 = vector.multi_reduction <add>, %105, %cst_36 [1] : vector<16x32xf32> to vector<16xf32>
    %111 = vector.shape_cast %110 : vector<16xf32> to vector<16x1xf32>
    %cst_37 = arith.constant 3.200000e+01 : f32
    %112 = vector.broadcast %cst_37 : f32 to vector<16x1xf32>
    %113 = arith.divf %111, %112 : vector<16x1xf32>
    %114 = vector.broadcast %113 : vector<16x1xf32> to vector<16x32xf32>
    %115 = arith.subf %105, %114 : vector<16x32xf32>
    %116 = arith.mulf %115, %115 : vector<16x32xf32>
    %cst_38 = arith.constant dense<0.000000e+00> : vector<16xf32>
    %117 = vector.multi_reduction <add>, %116, %cst_38 [1] : vector<16x32xf32> to vector<16xf32>
    %118 = vector.shape_cast %117 : vector<16xf32> to vector<16x1xf32>
    %cst_39 = arith.constant 3.200000e+01 : f32
    %119 = vector.broadcast %cst_39 : f32 to vector<16x1xf32>
    %120 = arith.divf %118, %119 : vector<16x1xf32>
    %121 = vector.broadcast %113 : vector<16x1xf32> to vector<16x32xf32>
    %122 = arith.subf %105, %121 : vector<16x32xf32>
    %cst_40 = arith.constant 9.99999974E-6 : f32
    %123 = vector.broadcast %cst_40 : f32 to vector<16x1xf32>
    %124 = arith.addf %120, %123 : vector<16x1xf32>
    %125 = math.rsqrt %124 : vector<16x1xf32>
    %126 = vector.broadcast %125 : vector<16x1xf32> to vector<16x32xf32>
    %127 = arith.mulf %122, %126 : vector<16x32xf32>
    %128 = vector.shape_cast %107 : vector<32xf32> to vector<1x32xf32>
    %129 = vector.broadcast %128 : vector<1x32xf32> to vector<16x32xf32>
    %130 = arith.mulf %127, %129 : vector<16x32xf32>
    %131 = vector.shape_cast %109 : vector<32xf32> to vector<1x32xf32>
    %132 = vector.broadcast %131 : vector<1x32xf32> to vector<16x32xf32>
    %133 = arith.addf %130, %132 : vector<16x32xf32>
    %c0_41 = arith.constant 0 : index
    %c0_42 = arith.constant 0 : index
    %134 = vector.load %arg6[%c0_41, %c0_42] : memref<32x64xf32, #tpu.memory_space<vmem>>, vector<32x64xf32>
    %cst_43 = arith.constant dense<0.000000e+00> : vector<16x64xf32>
    %135 = tpu.matmul %133, %134, %cst_43 {dimension_numbers = #tpu.dot_dimension_numbers<[1], [0], [0], [1], [0, 0, 1, 1], [], []>} : vector<16x32xf32>, vector<32x64xf32>, vector<16x64xf32> -> vector<16x64xf32>
    %136 = vector.extract_strided_slice %0 {offsets = [7, 0], sizes = [1, 64], strides = [1, 1]} : vector<8x64xf32> to vector<1x64xf32>
    %137 = vector.shape_cast %136 : vector<1x64xf32> to vector<64xf32>
    %138 = vector.shape_cast %137 : vector<64xf32> to vector<1x64xf32>
    %139 = vector.broadcast %138 : vector<1x64xf32> to vector<16x64xf32>
    %140 = arith.addf %135, %139 : vector<16x64xf32>
    %cst_44 = arith.constant 5.000000e-01 : f32
    %141 = vector.broadcast %cst_44 : f32 to vector<16x64xf32>
    %142 = arith.mulf %141, %140 : vector<16x64xf32>
    %cst_45 = arith.constant 4.471500e-02 : f32
    %143 = vector.broadcast %cst_45 : f32 to vector<16x64xf32>
    %144 = arith.mulf %143, %140 : vector<16x64xf32>
    %145 = arith.mulf %144, %140 : vector<16x64xf32>
    %146 = arith.mulf %145, %140 : vector<16x64xf32>
    %147 = arith.addf %140, %146 : vector<16x64xf32>
    %cst_46 = arith.constant 0.797884583 : f32
    %148 = vector.broadcast %cst_46 : f32 to vector<16x64xf32>
    %149 = arith.mulf %148, %147 : vector<16x64xf32>
    %150 = math.tanh %149 : vector<16x64xf32>
    %cst_47 = arith.constant 1.000000e+00 : f32
    %151 = vector.broadcast %cst_47 : f32 to vector<16x64xf32>
    %152 = arith.addf %151, %150 : vector<16x64xf32>
    %153 = arith.mulf %142, %152 : vector<16x64xf32>
    %c0_48 = arith.constant 0 : index
    %c0_49 = arith.constant 0 : index
    %154 = vector.load %arg7[%c0_48, %c0_49] : memref<64x32xf32, #tpu.memory_space<vmem>>, vector<64x32xf32>
    %cst_50 = arith.constant dense<0.000000e+00> : vector<16x32xf32>
    %155 = tpu.matmul %153, %154, %cst_50 {dimension_numbers = #tpu.dot_dimension_numbers<[1], [0], [0], [1], [0, 0, 1, 1], [], []>} : vector<16x64xf32>, vector<64x32xf32>, vector<16x32xf32> -> vector<16x32xf32>
    %156 = arith.addf %105, %155 : vector<16x32xf32>
    %157 = vector.extract_strided_slice %0 {offsets = [6, 0], sizes = [1, 32], strides = [1, 1]} : vector<8x64xf32> to vector<1x32xf32>
    %158 = vector.shape_cast %157 : vector<1x32xf32> to vector<32xf32>
    %159 = vector.shape_cast %158 : vector<32xf32> to vector<1x32xf32>
    %160 = vector.broadcast %159 : vector<1x32xf32> to vector<16x32xf32>
    %161 = arith.addf %156, %160 : vector<16x32xf32>
    %162 = vector.extract_strided_slice %0 {offsets = [4, 0], sizes = [1, 32], strides = [1, 1]} : vector<8x64xf32> to vector<1x32xf32>
    %163 = vector.shape_cast %162 : vector<1x32xf32> to vector<32xf32>
    %164 = vector.extract_strided_slice %0 {offsets = [5, 0], sizes = [1, 32], strides = [1, 1]} : vector<8x64xf32> to vector<1x32xf32>
    %165 = vector.shape_cast %164 : vector<1x32xf32> to vector<32xf32>
    %cst_51 = arith.constant dense<0.000000e+00> : vector<16xf32>
    %166 = vector.multi_reduction <add>, %161, %cst_51 [1] : vector<16x32xf32> to vector<16xf32>
    %167 = vector.shape_cast %166 : vector<16xf32> to vector<16x1xf32>
    %cst_52 = arith.constant 3.200000e+01 : f32
    %168 = vector.broadcast %cst_52 : f32 to vector<16x1xf32>
    %169 = arith.divf %167, %168 : vector<16x1xf32>
    %170 = vector.broadcast %169 : vector<16x1xf32> to vector<16x32xf32>
    %171 = arith.subf %161, %170 : vector<16x32xf32>
    %172 = arith.mulf %171, %171 : vector<16x32xf32>
    %cst_53 = arith.constant dense<0.000000e+00> : vector<16xf32>
    %173 = vector.multi_reduction <add>, %172, %cst_53 [1] : vector<16x32xf32> to vector<16xf32>
    %174 = vector.shape_cast %173 : vector<16xf32> to vector<16x1xf32>
    %cst_54 = arith.constant 3.200000e+01 : f32
    %175 = vector.broadcast %cst_54 : f32 to vector<16x1xf32>
    %176 = arith.divf %174, %175 : vector<16x1xf32>
    %177 = vector.broadcast %169 : vector<16x1xf32> to vector<16x32xf32>
    %178 = arith.subf %161, %177 : vector<16x32xf32>
    %cst_55 = arith.constant 9.99999974E-6 : f32
    %179 = vector.broadcast %cst_55 : f32 to vector<16x1xf32>
    %180 = arith.addf %176, %179 : vector<16x1xf32>
    %181 = math.rsqrt %180 : vector<16x1xf32>
    %182 = vector.broadcast %181 : vector<16x1xf32> to vector<16x32xf32>
    %183 = arith.mulf %178, %182 : vector<16x32xf32>
    %184 = vector.shape_cast %163 : vector<32xf32> to vector<1x32xf32>
    %185 = vector.broadcast %184 : vector<1x32xf32> to vector<16x32xf32>
    %186 = arith.mulf %183, %185 : vector<16x32xf32>
    %187 = vector.shape_cast %165 : vector<32xf32> to vector<1x32xf32>
    %188 = vector.broadcast %187 : vector<1x32xf32> to vector<16x32xf32>
    %189 = arith.addf %186, %188 : vector<16x32xf32>
    %c0_56 = arith.constant 0 : index
    %c0_57 = arith.constant 0 : index
    %190 = vector.load %arg8[%c0_56, %c0_57] : memref<32x128xf32, #tpu.memory_space<vmem>>, vector<32x128xf32>
    %cst_58 = arith.constant dense<0.000000e+00> : vector<16x128xf32>
    %191 = tpu.matmul %189, %190, %cst_58 {dimension_numbers = #tpu.dot_dimension_numbers<[1], [0], [0], [1], [0, 0, 1, 1], [], []>} : vector<16x32xf32>, vector<32x128xf32>, vector<16x128xf32> -> vector<16x128xf32>
    %c0_59 = arith.constant 0 : index
    %c0_60 = arith.constant 0 : index
    %192 = vector.load %arg9[%c0_59, %c0_60] : memref<16x128xf32, #tpu.memory_space<vmem>>, vector<16x128xf32>
    tpu.vector_store %arg9[%c0_59, %c0_60], %191 {strides = array<i32>} : memref<16x128xf32, #tpu.memory_space<vmem>>, vector<16x128xf32>,
    return
  }
}

</mosaic_0001>

<llo_original>
// kernel: forward_pallas.1
$region0: #{forward_pallas.1}
  #allocation0 [shape = 'u32[]', space=smem, size = 0x4, offset = 0x4, fixed_abs, tag = 'smem constant byte address 0x4 - core index']
  #allocation1 [shape = 'u32[144,128]{1,0:T(1,128)}', space=vmem, size = 0x12000, scoped, tag = 'internal scratch']
  %s0 = inlined_call_operand.vmem [shape: s32[16,1], index: 0, kind: input, shape index: {}]
  %s1 = inlined_call_operand.vmem [shape: s32[1,16], index: 1, kind: input, shape index: {}]
  %s2 = inlined_call_operand.vmem [shape: f32[128,32], index: 2, kind: input, shape index: {}]
  %s3 = inlined_call_operand.vmem [shape: f32[32,128], index: 3, kind: input, shape index: {}]
  %s4 = inlined_call_operand.vmem [shape: f32[2,16,32], index: 4, kind: input, shape index: {}]
  %s5 = inlined_call_operand.vmem [shape: f32[8,64], index: 5, kind: input, shape index: {}]
  %s6 = inlined_call_operand.vmem [shape: f32[32,64], index: 6, kind: input, shape index: {}]
  %s7 = inlined_call_operand.vmem [shape: f32[64,32], index: 7, kind: input, shape index: {}]
  %s8 = inlined_call_operand.vmem [shape: f32[32,128], index: 8, kind: input, shape index: {}]
  %s9 = inlined_call_operand.hbm [shape: f32[16,128], index: 9, kind: output, shape index: {}]
  %s10 = sld [smem:[#allocation0]]
  $region46: #{forward_pallas.1} parent=0
    _
  %s12 = ssub.s32 1, %s10
  %s13 = scalar_select 0, %s12, %s10
  $region1: #{forward_pallas.1} parent=0
    #allocation2 [shape = 'u8[8192]{0}', space=vmem, size = 0x2000, scoped, tag = 'output window, operand 0, single buffered']
    #allocation3 [shape = 's32[1]{0}', space=sflag, size = 0x4, scoped, tag = 'scoped memory for forward_pallas.1']
    %14 = vsyncpa [#allocation3], 0
    // Predicated region
    $region2: #{forward_pallas.1} parent=1 // pred_check
      _
    $region3: #{forward_pallas.1} parent=1 // pred_check_branch
      %16 = sbr.rel (0) target = $region5
    $region4: #{forward_pallas.1} parent=1 // pred_region
      _
    $region5: #{forward_pallas.1} parent=1 // pred_fallthru
      _
    // Predicated region
    $region6: #{forward_pallas.1} parent=1 // pred_check
      _
    $region7: #{forward_pallas.1} parent=1 // pred_check_branch
      %18 = sbr.rel (0) target = $region9
    $region8: #{forward_pallas.1} parent=1 // pred_region
      _
    $region9: #{forward_pallas.1} parent=1 // pred_fallthru
      _
    // Predicated region
    $region10: #{forward_pallas.1} parent=1 // pred_check
      _
    $region11: #{forward_pallas.1} parent=1 // pred_check_branch
      %20 = sbr.rel (0) target = $region13
    $region12: #{forward_pallas.1} parent=1 // pred_region
      _
    $region13: #{forward_pallas.1} parent=1 // pred_fallthru
      _
    // Predicated region
    $region14: #{forward_pallas.1} parent=1 // pred_check
      _
    $region15: #{forward_pallas.1} parent=1 // pred_check_branch
      %22 = sbr.rel (0) target = $region17
    $region16: #{forward_pallas.1} parent=1 // pred_region
      _
    $region17: #{forward_pallas.1} parent=1 // pred_fallthru
      _
    // Predicated region
    $region18: #{forward_pallas.1} parent=1 // pred_check
      _
    $region19: #{forward_pallas.1} parent=1 // pred_check_branch
      %24 = sbr.rel (0) target = $region21
    $region20: #{forward_pallas.1} parent=1 // pred_region
      _
    $region21: #{forward_pallas.1} parent=1 // pred_fallthru
      _
    // Predicated region
    $region22: #{forward_pallas.1} parent=1 // pred_check
      _
    $region23: #{forward_pallas.1} parent=1 // pred_check_branch
      %26 = sbr.rel (0) target = $region25
    $region24: #{forward_pallas.1} parent=1 // pred_region
      _
    $region25: #{forward_pallas.1} parent=1 // pred_fallthru
      _
    // Predicated region
    $region26: #{forward_pallas.1} parent=1 // pred_check
      _
    $region27: #{forward_pallas.1} parent=1 // pred_check_branch
      %28 = sbr.rel (0) target = $region29
    $region28: #{forward_pallas.1} parent=1 // pred_region
      _
    $region29: #{forward_pallas.1} parent=1 // pred_fallthru
      _
    // Predicated region
    $region30: #{forward_pallas.1} parent=1 // pred_check
      _
    $region31: #{forward_pallas.1} parent=1 // pred_check_branch
      %30 = sbr.rel (0) target = $region33
    $region32: #{forward_pallas.1} parent=1 // pred_region
      _
    $region33: #{forward_pallas.1} parent=1 // pred_fallthru
      _
    // Predicated region
    $region34: #{forward_pallas.1} parent=1 // pred_check
      _
    $region35: #{forward_pallas.1} parent=1 // pred_check_branch
      %32 = sbr.rel (0) target = $region37
    $region36: #{forward_pallas.1} parent=1 // pred_region
      _
    $region37: #{forward_pallas.1} parent=1 // pred_fallthru
      _
    %v33 = vld [vmem:[%s5] sm:$0xff]
    %v34 = vld [vmem:[%s0] sm:$0xff]
    %v35 = vld [vmem:[%s0 + $0x8] sm:$0xff]
    %v36 = vlaneseq
    %v37 = vand.u32 %v36, 127
    %38 = vset.pattern.permute.xlu0 0
    %39 = vperm.xlu0 %38, %v34
    %v40 = vpop.permute.xlu0 %39
    %41 = vset.pattern.permute.xlu0 0
    %42 = vperm.xlu0 %41, %v35
    %v43 = vpop.permute.xlu0 %42
    %vm44 = vcmp.eq.s32.totalorder %v37, %v40
    %vm45 = vcmp.eq.s32.totalorder %v37, %v43
    %v46 = vsel %vm44, 1, 0
    %v47 = vsel %vm45, 1, 0
    %v48 = vcvt.s32.f32 %v46
    %v49 = vcvt.s32.f32 %v47
    %v50 = vld [vmem:[%s2] sm:$0xff]
    %v51 = vld [vmem:[%s2 + $0x8] sm:$0xff]
    %v52 = vld [vmem:[%s2 + $0x10] sm:$0xff]
    %v53 = vld [vmem:[%s2 + $0x18] sm:$0xff]
    %v54 = vld [vmem:[%s2 + $0x20] sm:$0xff]
    %v55 = vld [vmem:[%s2 + $0x28] sm:$0xff]
    %v56 = vld [vmem:[%s2 + $0x30] sm:$0xff]
    %v57 = vld [vmem:[%s2 + $0x38] sm:$0xff]
    %v58 = vld [vmem:[%s2 + $0x40] sm:$0xff]
    %v59 = vld [vmem:[%s2 + $0x48] sm:$0xff]
    %v60 = vld [vmem:[%s2 + $0x50] sm:$0xff]
    %v61 = vld [vmem:[%s2 + $0x58] sm:$0xff]
    %v62 = vld [vmem:[%s2 + $0x60] sm:$0xff]
    %v63 = vld [vmem:[%s2 + $0x68] sm:$0xff]
    %v64 = vld [vmem:[%s2 + $0x70] sm:$0xff]
    %v65 = vld [vmem:[%s2 + $0x78] sm:$0xff]
    %66 = vmatprep.subr.mxu0 0.0
    %67 = vmatpush1.msra.mxu0 %v50
    %68 = vmatprep.subr.mxu0 0.0
    %69 = vmatpush1.msra.mxu0 %v51
    %70 = vmatprep.subr.mxu0 0.0
    %71 = vmatpush1.msra.mxu0 %v52
    %72 = vmatprep.subr.mxu0 0.0
    %73 = vmatpush1.msra.mxu0 %v53
    %74 = vmatprep.subr.mxu0 0.0
    %75 = vmatpush1.msra.mxu0 %v54
    %76 = vmatprep.subr.mxu0 0.0
    %77 = vmatpush1.msra.mxu0 %v55
    %78 = vmatprep.subr.mxu0 0.0
    %79 = vmatpush1.msra.mxu0 %v56
    %80 = vmatprep.subr.mxu0 0.0
    %81 = vmatpush1.msra.mxu0 %v57
    %82 = vmatprep.subr.mxu0 0.0
    %83 = vmatpush1.msra.mxu0 %v58
    %84 = vmatprep.subr.mxu0 0.0
    %85 = vmatpush1.msra.mxu0 %v59
    %86 = vmatprep.subr.mxu0 0.0
    %87 = vmatpush1.msra.mxu0 %v60
    %88 = vmatprep.subr.mxu0 0.0
    %89 = vmatpush1.msra.mxu0 %v61
    %90 = vmatprep.subr.mxu0 0.0
    %91 = vmatpush1.msra.mxu0 %v62
    %92 = vmatprep.subr.mxu0 0.0
    %93 = vmatpush1.msra.mxu0 %v63
    %94 = vmatprep.subr.mxu0 0.0
    %95 = vmatpush1.msra.mxu0 %v64
    %96 = vmatprep.subr.mxu0 0.0
    %97 = vmatpush1.msra.mxu0 %v65
    %98 = vmatprep.subr.mxu0 0.0
    %99 = vmatpush1.msra.mxu0 0.0
    %100 = vmatprep.subr.mxu0 0.0
    %101 = vmatpush1.msra.mxu0 0.0
    %102 = vmatprep.subr.mxu0 0.0
    %103 = vmatpush1.msra.mxu0 0.0
    %104 = vmatprep.subr.mxu0 0.0
    %105 = vmatpush1.msra.mxu0 0.0
    %106 = vmatprep.subr.mxu0 0.0
    %107 = vmatpush1.msra.mxu0 0.0
    %108 = vmatprep.subr.mxu0 0.0
    %109 = vmatpush1.msra.mxu0 0.0
    %110 = vmatprep.subr.mxu0 0.0
    %111 = vmatpush1.msra.mxu0 0.0
    %112 = vmatprep.subr.mxu0 0.0
    %113 = vmatpush1.msra.mxu0 0.0
    %114 = vmatprep.subr.mxu0 0.0
    %115 = vmatpush1.msra.mxu0 0.0
    %116 = vmatprep.subr.mxu0 0.0
    %117 = vmatpush1.msra.mxu0 0.0
    %118 = vmatprep.subr.mxu0 0.0
    %119 = vmatpush1.msra.mxu0 0.0
    %120 = vmatprep.subr.mxu0 0.0
    %121 = vmatpush1.msra.mxu0 0.0
    %122 = vmatprep.subr.mxu0 0.0
    %123 = vmatpush1.msra.mxu0 0.0
    %124 = vmatprep.subr.mxu0 0.0
    %125 = vmatpush1.msra.mxu0 0.0
    %126 = vmatprep.subr.mxu0 0.0
    %127 = vmatpush1.msra.mxu0 0.0
    %128 = vmatprep.subr.mxu0 0.0
    %129 = vmatpush1.msra.mxu0 0.0
    %130 = vmatprep.mubr.f32.mxu0 0.0
    %131 = vmatmul.mubr.f32.gmra.mrb[0].mxu0 %v48
    %v132 = vpop.f32.mrb[0].mxu0
    %v133 = vadd.f32 0.0, %v132
    %v134 = vpop.f32.mrb[0].mxu0
    %135 = vmatprep.mubr.f32.mxu0 0.0
    %136 = vmatmul.mubr.f32.gmra.mrb[0].mxu0 %v49
    %v137 = vpop.f32.mrb[0].mxu0
    %v138 = vadd.f32 0.0, %v137
    %v139 = vpop.f32.mrb[0].mxu0
    %140 = vdwg.mxu0
    %v141 = vlaneseq
    %v142 = vshrl.u32 %v141, 7
    %v143 = vadd.s32 %v142, 8
    %v144 = vshra.s32 %v142, 3
    %v145 = vshra.s32 %v143, 3
    %v146 = vshra.s32 %v37, 3
    %vm147 = vcmp.eq.s32.totalorder %v144, %v146
    %vm148 = vcmp.eq.s32.totalorder %v145, %v146
    %v149 = vand.u32 %v37, 7
    %v150 = vand.u32 %v142, 7
    %v151 = vand.u32 %v143, 7
    %vm152 = vcmp.le.s32.totalorder %v149, %v150
    %vm153 = vcmp.le.s32.totalorder %v149, %v151
    %v154 = vld [vmem:[%s1] sm:$0x1]
    %vm155 = vcmp.gt.s32.totalorder %v154, 0
    %vm156 = vmand %vm147, %vm152
    %vm157 = vmand %vm148, %vm153
    %v158 = vsel %vm155, 1, 0
    %v159 = vlaneseq
    %v160 = vshrl.u32 %v159, 7
    %v161 = vsub.s32 0, %v160
    %v162 = vrot.slane %v158, %v161
    %vm163 = vcmp.eq.s32.totalorder %v162, 1
    %vm164 = vmand %vm156, %vm163
    %vm165 = vmand %vm157, %vm163
    %v166 = vsel %vm147, -1e+09, -2e+09
    %v167 = vsel %vm148, -1e+09, -2e+09
    %v168 = vsel %vm164, 0.0, %v166
    %v169 = vsel %vm165, 0.0, %v167
    %vm170 = vcmask 261120
    %v171 = vsel %vm170, %v133, 0.0
    %172 = vadd.xlane.f32.xlu0 %v171
    %v173 = vpop.xlane.xlu0 %172
    %v174 = vsel %vm170, %v138, 0.0
    %175 = vadd.xlane.f32.xlu0 %v174
    %v176 = vpop.xlane.xlu0 %175
    %v177 = vrcp.pop 32.0
    %v178 = vmul.f32 %v173, %v177
    %v179 = vmul.f32 %v176, %v177
    %v180 = vsub.f32 %v133, %v178
    %v181 = vsub.f32 %v138, %v179
    %v182 = vmul.f32 %v180, %v180
    %v183 = vmul.f32 %v181, %v181
    %v184 = vsel %vm170, %v182, 0.0
    %185 = vadd.xlane.f32.xlu0 %v184
    %v186 = vpop.xlane.xlu0 %185
    %v187 = vsel %vm170, %v183, 0.0
    %188 = vadd.xlane.f32.xlu0 %v187
    %v189 = vpop.xlane.xlu0 %188
    %v190 = vmul.f32 %v186, %v177
    %v191 = vmul.f32 %v189, %v177
    %v192 = vadd.f32 %v190, 1e-05
    %v193 = vadd.f32 %v191, 1e-05
    %v194 = vrsqrt.pop %v192
    %v195 = vrsqrt.pop %v193
    %v196 = vmul.f32 %v180, %v194
    %v197 = vmul.f32 %v181, %v195
    %v198 = vlaneseq
    %v199 = vshrl.u32 %v198, 7
    %v200 = vsub.s32 0, %v199
    %v201 = vrot.slane %v33, %v200
    %v202 = vmul.f32 %v196, %v201
    %v203 = vmul.f32 %v197, %v201
    %v204 = vlaneseq
    %v205 = vshrl.u32 %v204, 7
    %v206 = vsub.s32 1, %v205
    %v207 = vrot.slane %v33, %v206
    %v208 = vadd.f32 %v202, %v207
    %v209 = vadd.f32 %v203, %v207
    %v210 = vld [vmem:[%s3] sm:$0xff]
    %v211 = vld [vmem:[%s3 + $0x8] sm:$0xff]
    %v212 = vld [vmem:[%s3 + $0x10] sm:$0xff]
    %v213 = vld [vmem:[%s3 + $0x18] sm:$0xff]
    %v215 = vsel %vm170, %v208, 0
    %v218 = vsel %vm170, %v209, 0
    %220 = vmatprep.subr.mxu0 0.0
    %221 = vmatpush1.msra.mxu0 %v210
    %222 = vmatprep.subr.mxu0 0.0
    %223 = vmatpush1.msra.mxu0 %v211
    %224 = vmatprep.subr.mxu0 0.0
    %225 = vmatpush1.msra.mxu0 %v212
    %226 = vmatprep.subr.mxu0 0.0
    %227 = vmatpush1.msra.mxu0 %v213
    %228 = vmatprep.subr.mxu0 0.0
    %229 = vmatpush1.msra.mxu0 0.0
    %230 = vmatprep.subr.mxu0 0.0
    %231 = vmatpush1.msra.mxu0 0.0
    %232 = vmatprep.subr.mxu0 0.0
    %233 = vmatpush1.msra.mxu0 0.0
    %234 = vmatprep.subr.mxu0 0.0
    %235 = vmatpush1.msra.mxu0 0.0
    %236 = vmatprep.subr.mxu0 0.0
    %237 = vmatpush1.msra.mxu0 0.0
    %238 = vmatprep.subr.mxu0 0.0
    %239 = vmatpush1.msra.mxu0 0.0
    %240 = vmatprep.subr.mxu0 0.0
    %241 = vmatpush1.msra.mxu0 0.0
    %242 = vmatprep.subr.mxu0 0.0
    %243 = vmatpush1.msra.mxu0 0.0
    %244 = vmatprep.subr.mxu0 0.0
    %245 = vmatpush1.msra.mxu0 0.0
    %246 = vmatprep.subr.mxu0 0.0
    %247 = vmatpush1.msra.mxu0 0.0
    %248 = vmatprep.subr.mxu0 0.0
    %249 = vmatpush1.msra.mxu0 0.0
    %250 = vmatprep.subr.mxu0 0.0
    %251 = vmatpush1.msra.mxu0 0.0
    %252 = vmatprep.subr.mxu0 0.0
    %253 = vmatpush1.msra.mxu0 0.0
    %254 = vmatprep.subr.mxu0 0.0
    %255 = vmatpush1.msra.mxu0 0.0
    %256 = vmatprep.subr.mxu0 0.0
    %257 = vmatpush1.msra.mxu0 0.0
    %258 = vmatprep.subr.mxu0 0.0
    %259 = vmatpush1.msra.mxu0 0.0
    %260 = vmatprep.subr.mxu0 0.0
    %261 = vmatpush1.msra.mxu0 0.0
    %262 = vmatprep.subr.mxu0 0.0
    %263 = vmatpush1.msra.mxu0 0.0
    %264 = vmatprep.subr.mxu0 0.0
    %265 = vmatpush1.msra.mxu0 0.0
    %266 = vmatprep.subr.mxu0 0.0
    %267 = vmatpush1.msra.mxu0 0.0
    %268 = vmatprep.subr.mxu0 0.0
    %269 = vmatpush1.msra.mxu0 0.0
    %270 = vmatprep.subr.mxu0 0.0
    %271 = vmatpush1.msra.mxu0 0.0
    %272 = vmatprep.subr.mxu0 0.0
    %273 = vmatpush1.msra.mxu0 0.0
    %274 = vmatprep.subr.mxu0 0.0
    %275 = vmatpush1.msra.mxu0 0.0
    %276 = vmatprep.subr.mxu0 0.0
    %277 = vmatpush1.msra.mxu0 0.0
    %278 = vmatprep.subr.mxu0 0.0
    %279 = vmatpush1.msra.mxu0 0.0
    %280 = vmatprep.subr.mxu0 0.0
    %281 = vmatpush1.msra.mxu0 0.0
    %282 = vmatprep.subr.mxu0 0.0
    %283 = vmatpush1.msra.mxu0 0.0
    %284 = vmatprep.mubr.f32.mxu0 0.0
    %285 = vmatmul.mubr.f32.gmra.mrb[0].mxu0 %v215
    %v286 = vpop.f32.mrb[0].mxu0
    %v287 = vadd.f32 0.0, %v286
    %v288 = vpop.f32.mrb[0].mxu0
    %289 = vmatprep.mubr.f32.mxu0 0.0
    %290 = vmatmul.mubr.f32.gmra.mrb[0].mxu0 %v218
    %v291 = vpop.f32.mrb[0].mxu0
    %v292 = vadd.f32 0.0, %v291
    %v293 = vpop.f32.mrb[0].mxu0
    %294 = vdwg.mxu0
    %297 = vrot.lane.b32.xlu0 %v287, 96
    %v298 = vpop.permute.xlu0 %297
    %299 = vrot.lane.b32.xlu0 %v292, 96
    %v300 = vpop.permute.xlu0 %299
    %vm301 = vcmask 130048
    %v302 = vsel %vm301, %v287, 0
    %v304 = vsel %vm301, %v292, 0
    %v306 = vsel %vm301, %v298, 0
    %v308 = vsel %vm301, %v300, 0
    %310 = vmatprep.subr.mxu0 0.0
    %311 = vmatpush1.xpose.msra.mxu0 %v306
    %312 = vmatprep.subr.mxu0 0.0
    %313 = vmatpush1.xpose.msra.mxu0 %v308
    %314 = vmatprep.subr.mxu0 0.0
    %315 = vmatpush1.xpose.msra.mxu0 0.0
    %316 = vmatprep.subr.mxu0 0.0
    %317 = vmatpush1.xpose.msra.mxu0 0.0
    %318 = vmatprep.subr.mxu0 0.0
    %319 = vmatpush1.xpose.msra.mxu0 0.0
    %320 = vmatprep.subr.mxu0 0.0
    %321 = vmatpush1.xpose.msra.mxu0 0.0
    %322 = vmatprep.subr.mxu0 0.0
    %323 = vmatpush1.xpose.msra.mxu0 0.0
    %324 = vmatprep.subr.mxu0 0.0
    %325 = vmatpush1.xpose.msra.mxu0 0.0
    %326 = vmatprep.subr.mxu0 0.0
    %327 = vmatpush1.xpose.msra.mxu0 0.0
    %328 = vmatprep.subr.mxu0 0.0
    %329 = vmatpush1.xpose.msra.mxu0 0.0
    %330 = vmatprep.subr.mxu0 0.0
    %331 = vmatpush1.xpose.msra.mxu0 0.0
    %332 = vmatprep.subr.mxu0 0.0
    %333 = vmatpush1.xpose.msra.mxu0 0.0
    %334 = vmatprep.subr.mxu0 0.0
    %335 = vmatpush1.xpose.msra.mxu0 0.0
    %336 = vmatprep.subr.mxu0 0.0
    %337 = vmatpush1.xpose.msra.mxu0 0.0
    %338 = vmatprep.subr.mxu0 0.0
    %339 = vmatpush1.xpose.msra.mxu0 0.0
    %340 = vmatprep.subr.mxu0 0.0
    %341 = vmatpush1.xpose.msra.mxu0 0.0
    %342 = vmatprep.subr.mxu0 0.0
    %343 = vmatpush1.xpose.msra.mxu0 0.0
    %344 = vmatprep.subr.mxu0 0.0
    %345 = vmatpush1.xpose.msra.mxu0 0.0
    %346 = vmatprep.subr.mxu0 0.0
    %347 = vmatpush1.xpose.msra.mxu0 0.0
    %348 = vmatprep.subr.mxu0 0.0
    %349 = vmatpush1.xpose.msra.mxu0 0.0
    %350 = vmatprep.subr.mxu0 0.0
    %351 = vmatpush1.xpose.msra.mxu0 0.0
    %352 = vmatprep.subr.mxu0 0.0
    %353 = vmatpush1.xpose.msra.mxu0 0.0
    %354 = vmatprep.subr.mxu0 0.0
    %355 = vmatpush1.xpose.msra.mxu0 0.0
    %356 = vmatprep.subr.mxu0 0.0
    %357 = vmatpush1.xpose.msra.mxu0 0.0
    %358 = vmatprep.subr.mxu0 0.0
    %359 = vmatpush1.xpose.msra.mxu0 0.0
    %360 = vmatprep.subr.mxu0 0.0
    %361 = vmatpush1.xpose.msra.mxu0 0.0
    %362 = vmatprep.subr.mxu0 0.0
    %363 = vmatpush1.xpose.msra.mxu0 0.0
    %364 = vmatprep.subr.mxu0 0.0
    %365 = vmatpush1.xpose.msra.mxu0 0.0
    %366 = vmatprep.subr.mxu0 0.0
    %367 = vmatpush1.xpose.msra.mxu0 0.0
    %368 = vmatprep.subr.mxu0 0.0
    %369 = vmatpush1.xpose.msra.mxu0 0.0
    %370 = vmatprep.subr.mxu0 0.0
    %371 = vmatpush1.xpose.msra.mxu0 0.0
    %372 = vmatprep.subr.mxu0 0.0
    %373 = vmatpush1.xpose.msra.mxu0 0.0
    %374 = vmatprep.mubr.f32.mxu0 0.0
    %375 = vmatmul.mubr.f32.gmra.mrb[0].mxu0 %v302
    %v376 = vpop.f32.mrb[0].mxu0
    %v377 = vadd.f32 %v168, %v376
    %v378 = vpop.f32.mrb[0].mxu0
    %379 = vmatprep.mubr.f32.mxu0 0.0
    %380 = vmatmul.mubr.f32.gmra.mrb[0].mxu0 %v304
    %v381 = vpop.f32.mrb[0].mxu0
    %v382 = vadd.f32 %v169, %v381
    %v383 = vpop.f32.mrb[0].mxu0
    %384 = vdwg.mxu0
    %v385 = vsel %vm301, %v377, -inf
    %386 = vmax.xlane.f32.xlu0 %v385
    %v387 = vpop.xlane.xlu0 %386
    %v388 = vsel %vm301, %v382, -inf
    %389 = vmax.xlane.f32.xlu0 %v388
    %v390 = vpop.xlane.xlu0 %389
    %v391 = vsub.f32 %v377, %v387
    %v392 = vsub.f32 %v382, %v390
    %v393 = vmul.f32 %v391, 1.442695
    %v394 = vpow.pop %v393
    %v395 = vmul.f32 %v392, 1.442695
    %v396 = vpow.pop %v395
    %v397 = vsel %vm301, %v394, 0.0
    %398 = vadd.xlane.f32.xlu0 %v397
    %v399 = vpop.xlane.xlu0 %398
    %v400 = vsel %vm301, %v396, 0.0
    %401 = vadd.xlane.f32.xlu0 %v400
    %v402 = vpop.xlane.xlu0 %401
    %v403 = vrcp.pop %v399
    %v404 = vrcp.pop %v402
    %v405 = vmul.f32 %v394, %v403
    %v406 = vmul.f32 %v396, %v404
    %407 = vrot.lane.b32.xlu0 %v287, 64
    %v408 = vpop.permute.xlu0 %407
    %409 = vrot.lane.b32.xlu0 %v292, 64
    %v410 = vpop.permute.xlu0 %409
    %v414 = vsel %vm301, %v405, 0
    %v417 = vsel %vm301, %v406, 0
    %419 = vmatprep.subr.mxu0 0.0
    %420 = vmatpush1.msra.mxu0 %v408
    %421 = vmatprep.subr.mxu0 0.0
    %422 = vmatpush1.msra.mxu0 %v410
    %423 = vmatprep.subr.mxu0 0.0
    %424 = vmatpush1.msra.mxu0 0.0
    %425 = vmatprep.subr.mxu0 0.0
    %426 = vmatpush1.msra.mxu0 0.0
    %427 = vmatprep.subr.mxu0 0.0
    %428 = vmatpush1.msra.mxu0 0.0
    %429 = vmatprep.subr.mxu0 0.0
    %430 = vmatpush1.msra.mxu0 0.0
    %431 = vmatprep.subr.mxu0 0.0
    %432 = vmatpush1.msra.mxu0 0.0
    %433 = vmatprep.subr.mxu0 0.0
    %434 = vmatpush1.msra.mxu0 0.0
    %435 = vmatprep.subr.mxu0 0.0
    %436 = vmatpush1.msra.mxu0 0.0
    %437 = vmatprep.subr.mxu0 0.0
    %438 = vmatpush1.msra.mxu0 0.0
    %439 = vmatprep.subr.mxu0 0.0
    %440 = vmatpush1.msra.mxu0 0.0
    %441 = vmatprep.subr.mxu0 0.0
    %442 = vmatpush1.msra.mxu0 0.0
    %443 = vmatprep.subr.mxu0 0.0
    %444 = vmatpush1.msra.mxu0 0.0
    %445 = vmatprep.subr.mxu0 0.0
    %446 = vmatpush1.msra.mxu0 0.0
    %447 = vmatprep.subr.mxu0 0.0
    %448 = vmatpush1.msra.mxu0 0.0
    %449 = vmatprep.subr.mxu0 0.0
    %450 = vmatpush1.msra.mxu0 0.0
    %451 = vmatprep.subr.mxu0 0.0
    %452 = vmatpush1.msra.mxu0 0.0
    %453 = vmatprep.subr.mxu0 0.0
    %454 = vmatpush1.msra.mxu0 0.0
    %455 = vmatprep.subr.mxu0 0.0
    %456 = vmatpush1.msra.mxu0 0.0
    %457 = vmatprep.subr.mxu0 0.0
    %458 = vmatpush1.msra.mxu0 0.0
    %459 = vmatprep.subr.mxu0 0.0
    %460 = vmatpush1.msra.mxu0 0.0
    %461 = vmatprep.subr.mxu0 0.0
    %462 = vmatpush1.msra.mxu0 0.0
    %463 = vmatprep.subr.mxu0 0.0
    %464 = vmatpush1.msra.mxu0 0.0
    %465 = vmatprep.subr.mxu0 0.0
    %466 = vmatpush1.msra.mxu0 0.0
    %467 = vmatprep.subr.mxu0 0.0
    %468 = vmatpush1.msra.mxu0 0.0
    %469 = vmatprep.subr.mxu0 0.0
    %470 = vmatpush1.msra.mxu0 0.0
    %471 = vmatprep.subr.mxu0 0.0
    %472 = vmatpush1.msra.mxu0 0.0
    %473 = vmatprep.subr.mxu0 0.0
    %474 = vmatpush1.msra.mxu0 0.0
    %475 = vmatprep.subr.mxu0 0.0
    %476 = vmatpush1.msra.mxu0 0.0
    %477 = vmatprep.subr.mxu0 0.0
    %478 = vmatpush1.msra.mxu0 0.0
    %479 = vmatprep.subr.mxu0 0.0
    %480 = vmatpush1.msra.mxu0 0.0
    %481 = vmatprep.subr.mxu0 0.0
    %482 = vmatpush1.msra.mxu0 0.0
    %483 = vmatprep.mubr.f32.mxu0 0.0
    %484 = vmatmul.mubr.f32.gmra.mrb[0].mxu0 %v414
    %v485 = vpop.f32.mrb[0].mxu0
    %v486 = vadd.f32 0.0, %v485
    %v487 = vpop.f32.mrb[0].mxu0
    %488 = vmatprep.mubr.f32.mxu0 0.0
    %489 = vmatmul.mubr.f32.gmra.mrb[0].mxu0 %v417
    %v490 = vpop.f32.mrb[0].mxu0
    %v491 = vadd.f32 0.0, %v490
    %v492 = vpop.f32.mrb[0].mxu0
    %493 = vdwg.mxu0
    %v494 = vld [vmem:[%s4] sm:$0xff]
    %v495 = vld [vmem:[%s4 + $0x8] sm:$0xff]
    %496 = vrot.lane.b32.xlu0 %v287, 112
    %v497 = vpop.permute.xlu0 %496
    %498 = vrot.lane.b32.xlu0 %v292, 112
    %v499 = vpop.permute.xlu0 %498
    %500 = vrot.lane.b32.xlu0 %v287, 80
    %v501 = vpop.permute.xlu0 %500
    %502 = vrot.lane.b32.xlu0 %v292, 80
    %v503 = vpop.permute.xlu0 %502
    %v504 = vsel %vm301, %v497, 0
    %v506 = vsel %vm301, %v499, 0
    %v508 = vsel %vm301, %v501, 0
    %v510 = vsel %vm301, %v503, 0
    %512 = vmatprep.subr.mxu0 0.0
    %513 = vmatpush1.xpose.msra.mxu0 %v508
    %514 = vmatprep.subr.mxu0 0.0
    %515 = vmatpush1.xpose.msra.mxu0 %v510
    %516 = vmatprep.subr.mxu0 0.0
    %517 = vmatpush1.xpose.msra.mxu0 0.0
    %518 = vmatprep.subr.mxu0 0.0
    %519 = vmatpush1.xpose.msra.mxu0 0.0
    %520 = vmatprep.subr.mxu0 0.0
    %521 = vmatpush1.xpose.msra.mxu0 0.0
    %522 = vmatprep.subr.mxu0 0.0
    %523 = vmatpush1.xpose.msra.mxu0 0.0
    %524 = vmatprep.subr.mxu0 0.0
    %525 = vmatpush1.xpose.msra.mxu0 0.0
    %526 = vmatprep.subr.mxu0 0.0
    %527 = vmatpush1.xpose.msra.mxu0 0.0
    %528 = vmatprep.subr.mxu0 0.0
    %529 = vmatpush1.xpose.msra.mxu0 0.0
    %530 = vmatprep.subr.mxu0 0.0
    %531 = vmatpush1.xpose.msra.mxu0 0.0
    %532 = vmatprep.subr.mxu0 0.0
    %533 = vmatpush1.xpose.msra.mxu0 0.0
    %534 = vmatprep.subr.mxu0 0.0
    %535 = vmatpush1.xpose.msra.mxu0 0.0
    %536 = vmatprep.subr.mxu0 0.0
    %537 = vmatpush1.xpose.msra.mxu0 0.0
    %538 = vmatprep.subr.mxu0 0.0
    %539 = vmatpush1.xpose.msra.mxu0 0.0
    %540 = vmatprep.subr.mxu0 0.0
    %541 = vmatpush1.xpose.msra.mxu0 0.0
    %542 = vmatprep.subr.mxu0 0.0
    %543 = vmatpush1.xpose.msra.mxu0 0.0
    %544 = vmatprep.subr.mxu0 0.0
    %545 = vmatpush1.xpose.msra.mxu0 0.0
    %546 = vmatprep.subr.mxu0 0.0
    %547 = vmatpush1.xpose.msra.mxu0 0.0
    %548 = vmatprep.subr.mxu0 0.0
    %549 = vmatpush1.xpose.msra.mxu0 0.0
    %550 = vmatprep.subr.mxu0 0.0
    %551 = vmatpush1.xpose.msra.mxu0 0.0
    %552 = vmatprep.subr.mxu0 0.0
    %553 = vmatpush1.xpose.msra.mxu0 0.0
    %554 = vmatprep.subr.mxu0 0.0
    %555 = vmatpush1.xpose.msra.mxu0 0.0
    %556 = vmatprep.subr.mxu0 0.0
    %557 = vmatpush1.xpose.msra.mxu0 0.0
    %558 = vmatprep.subr.mxu0 0.0
    %559 = vmatpush1.xpose.msra.mxu0 0.0
    %560 = vmatprep.subr.mxu0 0.0
    %561 = vmatpush1.xpose.msra.mxu0 0.0
    %562 = vmatprep.subr.mxu0 0.0
    %563 = vmatpush1.xpose.msra.mxu0 0.0
    %564 = vmatprep.subr.mxu0 0.0
    %565 = vmatpush1.xpose.msra.mxu0 0.0
    %566 = vmatprep.subr.mxu0 0.0
    %567 = vmatpush1.xpose.msra.mxu0 0.0
    %568 = vmatprep.subr.mxu0 0.0
    %569 = vmatpush1.xpose.msra.mxu0 0.0
    %570 = vmatprep.subr.mxu0 0.0
    %571 = vmatpush1.xpose.msra.mxu0 0.0
    %572 = vmatprep.subr.mxu0 0.0
    %573 = vmatpush1.xpose.msra.mxu0 0.0
    %574 = vmatprep.subr.mxu0 0.0
    %575 = vmatpush1.xpose.msra.mxu0 0.0
    %576 = vmatprep.mubr.f32.mxu0 0.0
    %577 = vmatmul.mubr.f32.gmra.mrb[0].mxu0 %v504
    %v578 = vpop.f32.mrb[0].mxu0
    %v579 = vadd.f32 %v168, %v578
    %v580 = vpop.f32.mrb[0].mxu0
    %581 = vmatprep.mubr.f32.mxu0 0.0
    %582 = vmatmul.mubr.f32.gmra.mrb[0].mxu0 %v506
    %v583 = vpop.f32.mrb[0].mxu0
    %v584 = vadd.f32 %v169, %v583
    %v585 = vpop.f32.mrb[0].mxu0
    %586 = vdwg.mxu0
    %v587 = vsel %vm301, %v579, -inf
    %588 = vmax.xlane.f32.xlu0 %v587
    %v589 = vpop.xlane.xlu0 %588
    %v590 = vsel %vm301, %v584, -inf
    %591 = vmax.xlane.f32.xlu0 %v590
    %v592 = vpop.xlane.xlu0 %591
    %v593 = vsub.f32 %v579, %v589
    %v594 = vsub.f32 %v584, %v592
    %v595 = vmul.f32 %v593, 1.442695
    %v596 = vpow.pop %v595
    %v597 = vmul.f32 %v594, 1.442695
    %v598 = vpow.pop %v597
    %v599 = vsel %vm301, %v596, 0.0
    %600 = vadd.xlane.f32.xlu0 %v599
    %v601 = vpop.xlane.xlu0 %600
    %v602 = vsel %vm301, %v598, 0.0
    %603 = vadd.xlane.f32.xlu0 %v602
    %v604 = vpop.xlane.xlu0 %603
    %v605 = vrcp.pop %v601
    %v606 = vrcp.pop %v604
    %v607 = vmul.f32 %v596, %v605
    %v608 = vmul.f32 %v598, %v606
    %609 = vrot.lane.b32.xlu0 %v287, 48
    %v610 = vpop.permute.xlu0 %609
    %611 = vrot.lane.b32.xlu0 %v292, 48
    %v612 = vpop.permute.xlu0 %611
    %v616 = vsel %vm301, %v607, 0
    %v619 = vsel %vm301, %v608, 0
    %621 = vmatprep.subr.mxu0 0.0
    %622 = vmatpush1.msra.mxu0 %v610
    %623 = vmatprep.subr.mxu0 0.0
    %624 = vmatpush1.msra.mxu0 %v612
    %625 = vmatprep.subr.mxu0 0.0
    %626 = vmatpush1.msra.mxu0 0.0
    %627 = vmatprep.subr.mxu0 0.0
    %628 = vmatpush1.msra.mxu0 0.0
    %629 = vmatprep.subr.mxu0 0.0
    %630 = vmatpush1.msra.mxu0 0.0
    %631 = vmatprep.subr.mxu0 0.0
    %632 = vmatpush1.msra.mxu0 0.0
    %633 = vmatprep.subr.mxu0 0.0
    %634 = vmatpush1.msra.mxu0 0.0
    %635 = vmatprep.subr.mxu0 0.0
    %636 = vmatpush1.msra.mxu0 0.0
    %637 = vmatprep.subr.mxu0 0.0
    %638 = vmatpush1.msra.mxu0 0.0
    %639 = vmatprep.subr.mxu0 0.0
    %640 = vmatpush1.msra.mxu0 0.0
    %641 = vmatprep.subr.mxu0 0.0
    %642 = vmatpush1.msra.mxu0 0.0
    %643 = vmatprep.subr.mxu0 0.0
    %644 = vmatpush1.msra.mxu0 0.0
    %645 = vmatprep.subr.mxu0 0.0
    %646 = vmatpush1.msra.mxu0 0.0
    %647 = vmatprep.subr.mxu0 0.0
    %648 = vmatpush1.msra.mxu0 0.0
    %649 = vmatprep.subr.mxu0 0.0
    %650 = vmatpush1.msra.mxu0 0.0
    %651 = vmatprep.subr.mxu0 0.0
    %652 = vmatpush1.msra.mxu0 0.0
    %653 = vmatprep.subr.mxu0 0.0
    %654 = vmatpush1.msra.mxu0 0.0
    %655 = vmatprep.subr.mxu0 0.0
    %656 = vmatpush1.msra.mxu0 0.0
    %657 = vmatprep.subr.mxu0 0.0
    %658 = vmatpush1.msra.mxu0 0.0
    %659 = vmatprep.subr.mxu0 0.0
    %660 = vmatpush1.msra.mxu0 0.0
    %661 = vmatprep.subr.mxu0 0.0
    %662 = vmatpush1.msra.mxu0 0.0
    %663 = vmatprep.subr.mxu0 0.0
    %664 = vmatpush1.msra.mxu0 0.0
    %665 = vmatprep.subr.mxu0 0.0
    %666 = vmatpush1.msra.mxu0 0.0
    %667 = vmatprep.subr.mxu0 0.0
    %668 = vmatpush1.msra.mxu0 0.0
    %669 = vmatprep.subr.mxu0 0.0
    %670 = vmatpush1.msra.mxu0 0.0
    %671 = vmatprep.subr.mxu0 0.0
    %672 = vmatpush1.msra.mxu0 0.0
    %673 = vmatprep.subr.mxu0 0.0
    %674 = vmatpush1.msra.mxu0 0.0
    %675 = vmatprep.subr.mxu0 0.0
    %676 = vmatpush1.msra.mxu0 0.0
    %677 = vmatprep.subr.mxu0 0.0
    %678 = vmatpush1.msra.mxu0 0.0
    %679 = vmatprep.subr.mxu0 0.0
    %680 = vmatpush1.msra.mxu0 0.0
    %681 = vmatprep.subr.mxu0 0.0
    %682 = vmatpush1.msra.mxu0 0.0
    %683 = vmatprep.subr.mxu0 0.0
    %684 = vmatpush1.msra.mxu0 0.0
    %685 = vmatprep.mubr.f32.mxu0 0.0
    %686 = vmatmul.mubr.f32.gmra.mrb[0].mxu0 %v616
    %v687 = vpop.f32.mrb[0].mxu0
    %v688 = vadd.f32 0.0, %v687
    %v689 = vpop.f32.mrb[0].mxu0
    %690 = vmatprep.mubr.f32.mxu0 0.0
    %691 = vmatmul.mubr.f32.gmra.mrb[0].mxu0 %v619
    %v692 = vpop.f32.mrb[0].mxu0
    %v693 = vadd.f32 0.0, %v692
    %v694 = vpop.f32.mrb[0].mxu0
    %695 = vdwg.mxu0
    %s696 = scalar_lea.vmem %s4, 16
    %v697 = vld [vmem:[%s696] sm:$0xff]
    %v698 = vld [vmem:[%s696 + $0x8] sm:$0xff]
    %v700 = vsel %vm301, %v688, 0
    %v703 = vsel %vm301, %v693, 0
    %705 = vmatprep.subr.mxu0 0.0
    %706 = vmatpush1.msra.mxu0 %v697
    %707 = vmatprep.subr.mxu0 0.0
    %708 = vmatpush1.msra.mxu0 %v698
    %709 = vmatprep.subr.mxu0 0.0
    %710 = vmatpush1.msra.mxu0 0.0
    %711 = vmatprep.subr.mxu0 0.0
    %712 = vmatpush1.msra.mxu0 0.0
    %713 = vmatprep.subr.mxu0 0.0
    %714 = vmatpush1.msra.mxu0 0.0
    %715 = vmatprep.subr.mxu0 0.0
    %716 = vmatpush1.msra.mxu0 0.0
    %717 = vmatprep.subr.mxu0 0.0
    %718 = vmatpush1.msra.mxu0 0.0
    %719 = vmatprep.subr.mxu0 0.0
    %720 = vmatpush1.msra.mxu0 0.0
    %721 = vmatprep.subr.mxu0 0.0
    %722 = vmatpush1.msra.mxu0 0.0
    %723 = vmatprep.subr.mxu0 0.0
    %724 = vmatpush1.msra.mxu0 0.0
    %725 = vmatprep.subr.mxu0 0.0
    %726 = vmatpush1.msra.mxu0 0.0
    %727 = vmatprep.subr.mxu0 0.0
    %728 = vmatpush1.msra.mxu0 0.0
    %729 = vmatprep.subr.mxu0 0.0
    %730 = vmatpush1.msra.mxu0 0.0
    %731 = vmatprep.subr.mxu0 0.0
    %732 = vmatpush1.msra.mxu0 0.0
    %733 = vmatprep.subr.mxu0 0.0
    %734 = vmatpush1.msra.mxu0 0.0
    %735 = vmatprep.subr.mxu0 0.0
    %736 = vmatpush1.msra.mxu0 0.0
    %737 = vmatprep.subr.mxu0 0.0
    %738 = vmatpush1.msra.mxu0 0.0
    %739 = vmatprep.subr.mxu0 0.0
    %740 = vmatpush1.msra.mxu0 0.0
    %741 = vmatprep.subr.mxu0 0.0
    %742 = vmatpush1.msra.mxu0 0.0
    %743 = vmatprep.subr.mxu0 0.0
    %744 = vmatpush1.msra.mxu0 0.0
    %745 = vmatprep.subr.mxu0 0.0
    %746 = vmatpush1.msra.mxu0 0.0
    %747 = vmatprep.subr.mxu0 0.0
    %748 = vmatpush1.msra.mxu0 0.0
    %749 = vmatprep.subr.mxu0 0.0
    %750 = vmatpush1.msra.mxu0 0.0
    %751 = vmatprep.subr.mxu0 0.0
    %752 = vmatpush1.msra.mxu0 0.0
    %753 = vmatprep.subr.mxu0 0.0
    %754 = vmatpush1.msra.mxu0 0.0
    %755 = vmatprep.subr.mxu0 0.0
    %756 = vmatpush1.msra.mxu0 0.0
    %757 = vmatprep.subr.mxu0 0.0
    %758 = vmatpush1.msra.mxu0 0.0
    %759 = vmatprep.subr.mxu0 0.0
    %760 = vmatpush1.msra.mxu0 0.0
    %761 = vmatprep.subr.mxu0 0.0
    %762 = vmatpush1.msra.mxu0 0.0
    %763 = vmatprep.subr.mxu0 0.0
    %764 = vmatpush1.msra.mxu0 0.0
    %765 = vmatprep.subr.mxu0 0.0
    %766 = vmatpush1.msra.mxu0 0.0
    %767 = vmatprep.subr.mxu0 0.0
    %768 = vmatpush1.msra.mxu0 0.0
    %769 = vmatprep.mubr.f32.mxu0 0.0
    %770 = vmatmul.mubr.f32.gmra.mrb[0].mxu0 %v700
    %v771 = vpop.f32.mrb[0].mxu0
    %v772 = vadd.f32 0.0, %v771
    %v773 = vpop.f32.mrb[0].mxu0
    %774 = vmatprep.mubr.f32.mxu0 0.0
    %775 = vmatmul.mubr.f32.gmra.mrb[0].mxu0 %v703
    %v776 = vpop.f32.mrb[0].mxu0
    %v777 = vadd.f32 0.0, %v776
    %v778 = vpop.f32.mrb[0].mxu0
    %779 = vdwg.mxu0
    %v781 = vsel %vm301, %v486, 0
    %v784 = vsel %vm301, %v491, 0
    %786 = vmatprep.subr.mxu0 0.0
    %787 = vmatpush1.msra.mxu0 %v494
    %788 = vmatprep.subr.mxu0 0.0
    %789 = vmatpush1.msra.mxu0 %v495
    %790 = vmatprep.subr.mxu0 0.0
    %791 = vmatpush1.msra.mxu0 0.0
    %792 = vmatprep.subr.mxu0 0.0
    %793 = vmatpush1.msra.mxu0 0.0
    %794 = vmatprep.subr.mxu0 0.0
    %795 = vmatpush1.msra.mxu0 0.0
    %796 = vmatprep.subr.mxu0 0.0
    %797 = vmatpush1.msra.mxu0 0.0
    %798 = vmatprep.subr.mxu0 0.0
    %799 = vmatpush1.msra.mxu0 0.0
    %800 = vmatprep.subr.mxu0 0.0
    %801 = vmatpush1.msra.mxu0 0.0
    %802 = vmatprep.subr.mxu0 0.0
    %803 = vmatpush1.msra.mxu0 0.0
    %804 = vmatprep.subr.mxu0 0.0
    %805 = vmatpush1.msra.mxu0 0.0
    %806 = vmatprep.subr.mxu0 0.0
    %807 = vmatpush1.msra.mxu0 0.0
    %808 = vmatprep.subr.mxu0 0.0
    %809 = vmatpush1.msra.mxu0 0.0
    %810 = vmatprep.subr.mxu0 0.0
    %811 = vmatpush1.msra.mxu0 0.0
    %812 = vmatprep.subr.mxu0 0.0
    %813 = vmatpush1.msra.mxu0 0.0
    %814 = vmatprep.subr.mxu0 0.0
    %815 = vmatpush1.msra.mxu0 0.0
    %816 = vmatprep.subr.mxu0 0.0
    %817 = vmatpush1.msra.mxu0 0.0
    %818 = vmatprep.subr.mxu0 0.0
    %819 = vmatpush1.msra.mxu0 0.0
    %820 = vmatprep.subr.mxu0 0.0
    %821 = vmatpush1.msra.mxu0 0.0
    %822 = vmatprep.subr.mxu0 0.0
    %823 = vmatpush1.msra.mxu0 0.0
    %824 = vmatprep.subr.mxu0 0.0
    %825 = vmatpush1.msra.mxu0 0.0
    %826 = vmatprep.subr.mxu0 0.0
    %827 = vmatpush1.msra.mxu0 0.0
    %828 = vmatprep.subr.mxu0 0.0
    %829 = vmatpush1.msra.mxu0 0.0
    %830 = vmatprep.subr.mxu0 0.0
    %831 = vmatpush1.msra.mxu0 0.0
    %832 = vmatprep.subr.mxu0 0.0
    %833 = vmatpush1.msra.mxu0 0.0
    %834 = vmatprep.subr.mxu0 0.0
    %835 = vmatpush1.msra.mxu0 0.0
    %836 = vmatprep.subr.mxu0 0.0
    %837 = vmatpush1.msra.mxu0 0.0
    %838 = vmatprep.subr.mxu0 0.0
    %839 = vmatpush1.msra.mxu0 0.0
    %840 = vmatprep.subr.mxu0 0.0
    %841 = vmatpush1.msra.mxu0 0.0
    %842 = vmatprep.subr.mxu0 0.0
    %843 = vmatpush1.msra.mxu0 0.0
    %844 = vmatprep.subr.mxu0 0.0
    %845 = vmatpush1.msra.mxu0 0.0
    %846 = vmatprep.subr.mxu0 0.0
    %847 = vmatpush1.msra.mxu0 0.0
    %848 = vmatprep.subr.mxu0 0.0
    %849 = vmatpush1.msra.mxu0 0.0
    %850 = vmatprep.mubr.f32.mxu0 0.0
    %851 = vmatmul.mubr.f32.gmra.mrb[0].mxu0 %v781
    %v852 = vpop.f32.mrb[0].mxu0
    %v853 = vadd.f32 %v772, %v852
    %v854 = vpop.f32.mrb[0].mxu0
    %855 = vmatprep.mubr.f32.mxu0 0.0
    %856 = vmatmul.mubr.f32.gmra.mrb[0].mxu0 %v784
    %v857 = vpop.f32.mrb[0].mxu0
    %v858 = vadd.f32 %v777, %v857
    %v859 = vpop.f32.mrb[0].mxu0
    %860 = vdwg.mxu0
    %v861 = vadd.f32 %v133, %v853
    %v862 = vadd.f32 %v138, %v858
    %v863 = vsel %vm170, %v861, 0.0
    %864 = vadd.xlane.f32.xlu0 %v863
    %v865 = vpop.xlane.xlu0 %864
    %v866 = vsel %vm170, %v862, 0.0
    %867 = vadd.xlane.f32.xlu0 %v866
    %v868 = vpop.xlane.xlu0 %867
    %v869 = vmul.f32 %v865, %v177
    %v870 = vmul.f32 %v868, %v177
    %v871 = vsub.f32 %v861, %v869
    %v872 = vsub.f32 %v862, %v870
    %v873 = vmul.f32 %v871, %v871
    %v874 = vmul.f32 %v872, %v872
    %v875 = vsel %vm170, %v873, 0.0
    %876 = vadd.xlane.f32.xlu0 %v875
    %v877 = vpop.xlane.xlu0 %876
    %v878 = vsel %vm170, %v874, 0.0
    %879 = vadd.xlane.f32.xlu0 %v878
    %v880 = vpop.xlane.xlu0 %879
    %v881 = vmul.f32 %v877, %v177
    %v882 = vmul.f32 %v880, %v177
    %v883 = vadd.f32 %v881, 1e-05
    %v884 = vadd.f32 %v882, 1e-05
    %v885 = vrsqrt.pop %v883
    %v886 = vrsqrt.pop %v884
    %v887 = vmul.f32 %v871, %v885
    %v888 = vmul.f32 %v872, %v886
    %v889 = vlaneseq
    %v890 = vshrl.u32 %v889, 7
    %v891 = vsub.s32 2, %v890
    %v892 = vrot.slane %v33, %v891
    %v893 = vmul.f32 %v887, %v892
    %v894 = vmul.f32 %v888, %v892
    %v895 = vlaneseq
    %v896 = vshrl.u32 %v895, 7
    %v897 = vsub.s32 3, %v896
    %v898 = vrot.slane %v33, %v897
    %v899 = vadd.f32 %v893, %v898
    %v900 = vadd.f32 %v894, %v898
    %v901 = vld [vmem:[%s6] sm:$0xff]
    %v902 = vld [vmem:[%s6 + $0x8] sm:$0xff]
    %v903 = vld [vmem:[%s6 + $0x10] sm:$0xff]
    %v904 = vld [vmem:[%s6 + $0x18] sm:$0xff]
    %v905 = vlaneseq
    %v906 = vshrl.u32 %v905, 7
    %v907 = vsub.s32 7, %v906
    %v908 = vrot.slane %v33, %v907
    %v910 = vsel %vm170, %v899, 0
    %v913 = vsel %vm170, %v900, 0
    %915 = vmatprep.subr.mxu0 0.0
    %916 = vmatpush1.msra.mxu0 %v901
    %917 = vmatprep.subr.mxu0 0.0
    %918 = vmatpush1.msra.mxu0 %v902
    %919 = vmatprep.subr.mxu0 0.0
    %920 = vmatpush1.msra.mxu0 %v903
    %921 = vmatprep.subr.mxu0 0.0
    %922 = vmatpush1.msra.mxu0 %v904
    %923 = vmatprep.subr.mxu0 0.0
    %924 = vmatpush1.msra.mxu0 0.0
    %925 = vmatprep.subr.mxu0 0.0
    %926 = vmatpush1.msra.mxu0 0.0
    %927 = vmatprep.subr.mxu0 0.0
    %928 = vmatpush1.msra.mxu0 0.0
    %929 = vmatprep.subr.mxu0 0.0
    %930 = vmatpush1.msra.mxu0 0.0
    %931 = vmatprep.subr.mxu0 0.0
    %932 = vmatpush1.msra.mxu0 0.0
    %933 = vmatprep.subr.mxu0 0.0
    %934 = vmatpush1.msra.mxu0 0.0
    %935 = vmatprep.subr.mxu0 0.0
    %936 = vmatpush1.msra.mxu0 0.0
    %937 = vmatprep.subr.mxu0 0.0
    %938 = vmatpush1.msra.mxu0 0.0
    %939 = vmatprep.subr.mxu0 0.0
    %940 = vmatpush1.msra.mxu0 0.0
    %941 = vmatprep.subr.mxu0 0.0
    %942 = vmatpush1.msra.mxu0 0.0
    %943 = vmatprep.subr.mxu0 0.0
    %944 = vmatpush1.msra.mxu0 0.0
    %945 = vmatprep.subr.mxu0 0.0
    %946 = vmatpush1.msra.mxu0 0.0
    %947 = vmatprep.subr.mxu0 0.0
    %948 = vmatpush1.msra.mxu0 0.0
    %949 = vmatprep.subr.mxu0 0.0
    %950 = vmatpush1.msra.mxu0 0.0
    %951 = vmatprep.subr.mxu0 0.0
    %952 = vmatpush1.msra.mxu0 0.0
    %953 = vmatprep.subr.mxu0 0.0
    %954 = vmatpush1.msra.mxu0 0.0
    %955 = vmatprep.subr.mxu0 0.0
    %956 = vmatpush1.msra.mxu0 0.0
    %957 = vmatprep.subr.mxu0 0.0
    %958 = vmatpush1.msra.mxu0 0.0
    %959 = vmatprep.subr.mxu0 0.0
    %960 = vmatpush1.msra.mxu0 0.0
    %961 = vmatprep.subr.mxu0 0.0
    %962 = vmatpush1.msra.mxu0 0.0
    %963 = vmatprep.subr.mxu0 0.0
    %964 = vmatpush1.msra.mxu0 0.0
    %965 = vmatprep.subr.mxu0 0.0
    %966 = vmatpush1.msra.mxu0 0.0
    %967 = vmatprep.subr.mxu0 0.0
    %968 = vmatpush1.msra.mxu0 0.0
    %969 = vmatprep.subr.mxu0 0.0
    %970 = vmatpush1.msra.mxu0 0.0
    %971 = vmatprep.subr.mxu0 0.0
    %972 = vmatpush1.msra.mxu0 0.0
    %973 = vmatprep.subr.mxu0 0.0
    %974 = vmatpush1.msra.mxu0 0.0
    %975 = vmatprep.subr.mxu0 0.0
    %976 = vmatpush1.msra.mxu0 0.0
    %977 = vmatprep.subr.mxu0 0.0
    %978 = vmatpush1.msra.mxu0 0.0
    %979 = vmatprep.mubr.f32.mxu0 0.0
    %980 = vmatmul.mubr.f32.gmra.mrb[0].mxu0 %v910
    %v981 = vpop.f32.mrb[0].mxu0
    %v982 = vadd.f32 %v908, %v981
    %v983 = vpop.f32.mrb[0].mxu0
    %984 = vmatprep.mubr.f32.mxu0 0.0
    %985 = vmatmul.mubr.f32.gmra.mrb[0].mxu0 %v913
    %v986 = vpop.f32.mrb[0].mxu0
    %v987 = vadd.f32 %v908, %v986
    %v988 = vpop.f32.mrb[0].mxu0
    %989 = vdwg.mxu0
    %v990 = vmul.f32 %v982, 0.5
    %v991 = vmul.f32 %v987, 0.5
    %v992 = vmul.f32 %v982, 0.044715
    %v993 = vmul.f32 %v987, 0.044715
    %v994 = vmul.f32 %v992, %v982
    %v995 = vmul.f32 %v993, %v987
    %v996 = vmul.f32 %v994, %v982
    %v997 = vmul.f32 %v995, %v987
    %v998 = vadd.f32 %v982, %v996
    %v999 = vadd.f32 %v987, %v997
    %v1000 = vmul.f32 %v998, 0.7978846
    %v1001 = vmul.f32 %v999, 0.7978846
    %v1002 = vtanh.pop %v1000
    %v1003 = vtanh.pop %v1001
    %v1004 = vadd.f32 %v1002, 1.0
    %v1005 = vadd.f32 %v1003, 1.0
    %v1006 = vmul.f32 %v990, %v1004
    %v1007 = vmul.f32 %v991, %v1005
    %v1008 = vld [vmem:[%s7] sm:$0xff]
    %v1009 = vld [vmem:[%s7 + $0x8] sm:$0xff]
    %v1010 = vld [vmem:[%s7 + $0x10] sm:$0xff]
    %v1011 = vld [vmem:[%s7 + $0x18] sm:$0xff]
    %v1012 = vld [vmem:[%s7 + $0x20] sm:$0xff]
    %v1013 = vld [vmem:[%s7 + $0x28] sm:$0xff]
    %v1014 = vld [vmem:[%s7 + $0x30] sm:$0xff]
    %v1015 = vld [vmem:[%s7 + $0x38] sm:$0xff]
    %vm1016 = vcmask 523264
    %v1018 = vsel %vm1016, %v1006, 0
    %v1021 = vsel %vm1016, %v1007, 0
    %1023 = vmatprep.subr.mxu0 0.0
    %1024 = vmatpush1.msra.mxu0 %v1008
    %1025 = vmatprep.subr.mxu0 0.0
    %1026 = vmatpush1.msra.mxu0 %v1009
    %1027 = vmatprep.subr.mxu0 0.0
    %1028 = vmatpush1.msra.mxu0 %v1010
    %1029 = vmatprep.subr.mxu0 0.0
    %1030 = vmatpush1.msra.mxu0 %v1011
    %1031 = vmatprep.subr.mxu0 0.0
    %1032 = vmatpush1.msra.mxu0 %v1012
    %1033 = vmatprep.subr.mxu0 0.0
    %1034 = vmatpush1.msra.mxu0 %v1013
    %1035 = vmatprep.subr.mxu0 0.0
    %1036 = vmatpush1.msra.mxu0 %v1014
    %1037 = vmatprep.subr.mxu0 0.0
    %1038 = vmatpush1.msra.mxu0 %v1015
    %1039 = vmatprep.subr.mxu0 0.0
    %1040 = vmatpush1.msra.mxu0 0.0
    %1041 = vmatprep.subr.mxu0 0.0
    %1042 = vmatpush1.msra.mxu0 0.0
    %1043 = vmatprep.subr.mxu0 0.0
    %1044 = vmatpush1.msra.mxu0 0.0
    %1045 = vmatprep.subr.mxu0 0.0
    %1046 = vmatpush1.msra.mxu0 0.0
    %1047 = vmatprep.subr.mxu0 0.0
    %1048 = vmatpush1.msra.mxu0 0.0
    %1049 = vmatprep.subr.mxu0 0.0
    %1050 = vmatpush1.msra.mxu0 0.0
    %1051 = vmatprep.subr.mxu0 0.0
    %1052 = vmatpush1.msra.mxu0 0.0
    %1053 = vmatprep.subr.mxu0 0.0
    %1054 = vmatpush1.msra.mxu0 0.0
    %1055 = vmatprep.subr.mxu0 0.0
    %1056 = vmatpush1.msra.mxu0 0.0
    %1057 = vmatprep.subr.mxu0 0.0
    %1058 = vmatpush1.msra.mxu0 0.0
    %1059 = vmatprep.subr.mxu0 0.0
    %1060 = vmatpush1.msra.mxu0 0.0
    %1061 = vmatprep.subr.mxu0 0.0
    %1062 = vmatpush1.msra.mxu0 0.0
    %1063 = vmatprep.subr.mxu0 0.0
    %1064 = vmatpush1.msra.mxu0 0.0
    %1065 = vmatprep.subr.mxu0 0.0
    %1066 = vmatpush1.msra.mxu0 0.0
    %1067 = vmatprep.subr.mxu0 0.0
    %1068 = vmatpush1.msra.mxu0 0.0
    %1069 = vmatprep.subr.mxu0 0.0
    %1070 = vmatpush1.msra.mxu0 0.0
    %1071 = vmatprep.subr.mxu0 0.0
    %1072 = vmatpush1.msra.mxu0 0.0
    %1073 = vmatprep.subr.mxu0 0.0
    %1074 = vmatpush1.msra.mxu0 0.0
    %1075 = vmatprep.subr.mxu0 0.0
    %1076 = vmatpush1.msra.mxu0 0.0
    %1077 = vmatprep.subr.mxu0 0.0
    %1078 = vmatpush1.msra.mxu0 0.0
    %1079 = vmatprep.subr.mxu0 0.0
    %1080 = vmatpush1.msra.mxu0 0.0
    %1081 = vmatprep.subr.mxu0 0.0
    %1082 = vmatpush1.msra.mxu0 0.0
    %1083 = vmatprep.subr.mxu0 0.0
    %1084 = vmatpush1.msra.mxu0 0.0
    %1085 = vmatprep.subr.mxu0 0.0
    %1086 = vmatpush1.msra.mxu0 0.0
    %1087 = vmatprep.mubr.f32.mxu0 0.0
    %1088 = vmatmul.mubr.f32.gmra.mrb[0].mxu0 %v1018
    %v1089 = vpop.f32.mrb[0].mxu0
    %v1090 = vadd.f32 0.0, %v1089
    %v1091 = vpop.f32.mrb[0].mxu0
    %1092 = vmatprep.mubr.f32.mxu0 0.0
    %1093 = vmatmul.mubr.f32.gmra.mrb[0].mxu0 %v1021
    %v1094 = vpop.f32.mrb[0].mxu0
    %v1095 = vadd.f32 0.0, %v1094
    %v1096 = vpop.f32.mrb[0].mxu0
    %1097 = vdwg.mxu0
    %v1098 = vadd.f32 %v861, %v1090
    %v1099 = vadd.f32 %v862, %v1095
    %v1100 = vlaneseq
    %v1101 = vshrl.u32 %v1100, 7
    %v1102 = vsub.s32 6, %v1101
    %v1103 = vrot.slane %v33, %v1102
    %v1104 = vadd.f32 %v1098, %v1103
    %v1105 = vadd.f32 %v1099, %v1103
    %v1106 = vsel %vm170, %v1104, 0.0
    %1107 = vadd.xlane.f32.xlu0 %v1106
    %v1108 = vpop.xlane.xlu0 %1107
    %v1109 = vsel %vm170, %v1105, 0.0
    %1110 = vadd.xlane.f32.xlu0 %v1109
    %v1111 = vpop.xlane.xlu0 %1110
    %v1112 = vmul.f32 %v1108, %v177
    %v1113 = vmul.f32 %v1111, %v177
    %v1114 = vsub.f32 %v1104, %v1112
    %v1115 = vsub.f32 %v1105, %v1113
    %v1116 = vmul.f32 %v1114, %v1114
    %v1117 = vmul.f32 %v1115, %v1115
    %v1118 = vsel %vm170, %v1116, 0.0
    %1119 = vadd.xlane.f32.xlu0 %v1118
    %v1120 = vpop.xlane.xlu0 %1119
    %v1121 = vsel %vm170, %v1117, 0.0
    %1122 = vadd.xlane.f32.xlu0 %v1121
    %v1123 = vpop.xlane.xlu0 %1122
    %v1124 = vmul.f32 %v1120, %v177
    %v1125 = vmul.f32 %v1123, %v177
    %v1126 = vadd.f32 %v1124, 1e-05
    %v1127 = vadd.f32 %v1125, 1e-05
    %v1128 = vrsqrt.pop %v1126
    %v1129 = vrsqrt.pop %v1127
    %v1130 = vmul.f32 %v1114, %v1128
    %v1131 = vmul.f32 %v1115, %v1129
    %v1132 = vlaneseq
    %v1133 = vshrl.u32 %v1132, 7
    %v1134 = vsub.s32 4, %v1133
    %v1135 = vrot.slane %v33, %v1134
    %v1136 = vmul.f32 %v1130, %v1135
    %v1137 = vmul.f32 %v1131, %v1135
    %v1138 = vlaneseq
    %v1139 = vshrl.u32 %v1138, 7
    %v1140 = vsub.s32 5, %v1139
    %v1141 = vrot.slane %v33, %v1140
    %v1142 = vadd.f32 %v1136, %v1141
    %v1143 = vadd.f32 %v1137, %v1141
    %v1144 = vld [vmem:[%s8] sm:$0xff]
    %v1145 = vld [vmem:[%s8 + $0x8] sm:$0xff]
    %v1146 = vld [vmem:[%s8 + $0x10] sm:$0xff]
    %v1147 = vld [vmem:[%s8 + $0x18] sm:$0xff]
    %v1149 = vsel %vm170, %v1142, 0
    %v1152 = vsel %vm170, %v1143, 0
    %1154 = vmatprep.subr.mxu0 0.0
    %1155 = vmatpush1.msra.mxu0 %v1144
    %1156 = vmatprep.subr.mxu0 0.0
    %1157 = vmatpush1.msra.mxu0 %v1145
    %1158 = vmatprep.subr.mxu0 0.0
    %1159 = vmatpush1.msra.mxu0 %v1146
    %1160 = vmatprep.subr.mxu0 0.0
    %1161 = vmatpush1.msra.mxu0 %v1147
    %1162 = vmatprep.subr.mxu0 0.0
    %1163 = vmatpush1.msra.mxu0 0.0
    %1164 = vmatprep.subr.mxu0 0.0
    %1165 = vmatpush1.msra.mxu0 0.0
    %1166 = vmatprep.subr.mxu0 0.0
    %1167 = vmatpush1.msra.mxu0 0.0
    %1168 = vmatprep.subr.mxu0 0.0
    %1169 = vmatpush1.msra.mxu0 0.0
    %1170 = vmatprep.subr.mxu0 0.0
    %1171 = vmatpush1.msra.mxu0 0.0
    %1172 = vmatprep.subr.mxu0 0.0
    %1173 = vmatpush1.msra.mxu0 0.0
    %1174 = vmatprep.subr.mxu0 0.0
    %1175 = vmatpush1.msra.mxu0 0.0
    %1176 = vmatprep.subr.mxu0 0.0
    %1177 = vmatpush1.msra.mxu0 0.0
    %1178 = vmatprep.subr.mxu0 0.0
    %1179 = vmatpush1.msra.mxu0 0.0
    %1180 = vmatprep.subr.mxu0 0.0
    %1181 = vmatpush1.msra.mxu0 0.0
    %1182 = vmatprep.subr.mxu0 0.0
    %1183 = vmatpush1.msra.mxu0 0.0
    %1184 = vmatprep.subr.mxu0 0.0
    %1185 = vmatpush1.msra.mxu0 0.0
    %1186 = vmatprep.subr.mxu0 0.0
    %1187 = vmatpush1.msra.mxu0 0.0
    %1188 = vmatprep.subr.mxu0 0.0
    %1189 = vmatpush1.msra.mxu0 0.0
    %1190 = vmatprep.subr.mxu0 0.0
    %1191 = vmatpush1.msra.mxu0 0.0
    %1192 = vmatprep.subr.mxu0 0.0
    %1193 = vmatpush1.msra.mxu0 0.0
    %1194 = vmatprep.subr.mxu0 0.0
    %1195 = vmatpush1.msra.mxu0 0.0
    %1196 = vmatprep.subr.mxu0 0.0
    %1197 = vmatpush1.msra.mxu0 0.0
    %1198 = vmatprep.subr.mxu0 0.0
    %1199 = vmatpush1.msra.mxu0 0.0
    %1200 = vmatprep.subr.mxu0 0.0
    %1201 = vmatpush1.msra.mxu0 0.0
    %1202 = vmatprep.subr.mxu0 0.0
    %1203 = vmatpush1.msra.mxu0 0.0
    %1204 = vmatprep.subr.mxu0 0.0
    %1205 = vmatpush1.msra.mxu0 0.0
    %1206 = vmatprep.subr.mxu0 0.0
    %1207 = vmatpush1.msra.mxu0 0.0
    %1208 = vmatprep.subr.mxu0 0.0
    %1209 = vmatpush1.msra.mxu0 0.0
    %1210 = vmatprep.subr.mxu0 0.0
    %1211 = vmatpush1.msra.mxu0 0.0
    %1212 = vmatprep.subr.mxu0 0.0
    %1213 = vmatpush1.msra.mxu0 0.0
    %1214 = vmatprep.subr.mxu0 0.0
    %1215 = vmatpush1.msra.mxu0 0.0
    %1216 = vmatprep.subr.mxu0 0.0
    %1217 = vmatpush1.msra.mxu0 0.0
    %1218 = vmatprep.mubr.f32.mxu0 0.0
    %1219 = vmatmul.mubr.f32.gmra.mrb[0].mxu0 %v1149
    %v1220 = vpop.f32.mrb[0].mxu0
    %v1221 = vadd.f32 0.0, %v1220
    %v1222 = vpop.f32.mrb[0].mxu0
    %1223 = vmatprep.mubr.f32.mxu0 0.0
    %1224 = vmatmul.mubr.f32.gmra.mrb[0].mxu0 %v1152
    %v1225 = vpop.f32.mrb[0].mxu0
    %v1226 = vadd.f32 0.0, %v1225
    %v1227 = vpop.f32.mrb[0].mxu0
    %1228 = vdwg.mxu0
    %1229 = vst [vmem:[#allocation2] sm:$0xff] %v1221
    %1230 = vst [vmem:[#allocation2 + $0x8] sm:$0xff] %v1226
    // Predicated region
    $region38: #{forward_pallas.1} parent=1 // pred_check
      _
    $region39: #{forward_pallas.1} parent=1 // pred_check_branch
      %1232 = sbr.rel (0) target = $region41
    $region40: #{forward_pallas.1} parent=1 // pred_region
      %s1234 = ssub.s32 256, 256
      %1235 = vsyncadd [#allocation3], %s1234
      %s1236 = sshll.u32 [#allocation2], 4
      %s1237 = int_to_ptr.vmem [resolvable:$true] %s1236
      %1242 = dma.vmem_to_hbm [thread:$0]  %s1237, 256, %s9, [#allocation3], 128, 128, 8
    $region41: #{forward_pallas.1} parent=1 // pred_fallthru
      _
    // Predicated region
    $region42: #{forward_pallas.1} parent=1 // pred_check
      _
    $region43: #{forward_pallas.1} parent=1 // pred_check_branch
      %1244 = sbr.rel (0) target = $region45
    $region44: #{forward_pallas.1} parent=1 // pred_region
      %1245 = dma.done [#allocation3], 256
    $region45: #{forward_pallas.1} parent=1 // pred_fallthru
      _
    %1246 = vsyncpa [#allocation3], 1

</llo_original>
